<compile_context>
chip_gen: v7x
topology: tpu7x:2x2x1
jax: 0.10.0
libtpu: 0.0.40
codegen_flags: <defaults>
</compile_context>

<pallas_src>
import functools

import jax
import jax.numpy as jnp
from jax import lax
from jax.experimental import pallas as pl
from jax.experimental.pallas import tpu as pltpu

# ----------------------------- model config ---------------------------------
B = 2           # batch
S = 8           # sequence length
D_MODEL = 32    # d_model
HIDDEN = 64     # ffn hidden_dim
NUM_HEADS = 4
HEAD_DIM = D_MODEL // NUM_HEADS
LN_EPS = 1e-5


# ------------------------------ Pallas kernel -------------------------------
def _self_attn_layer_kernel(
    x_ref,        # (1, S, D)   one batch element per program
    vecs_ref,     # (8, D)      rows: ln1_g, ln1_b, bo, ln2_g, ln2_b, b2, pad, pad
    wqkv_ref,     # (D, 3D)     fused QKV weight (Q columns pre-scaled)
    bqkv_ref,     # (1, 3D)     fused QKV bias   (Q part pre-scaled)
    wo_ref,       # (D, D)
    w1_ref,       # (D, HIDDEN)
    b1_ref,       # (1, HIDDEN)
    w2_ref,       # (HIDDEN, D)
    out_ref,      # (1, S, D)
    *, num_heads, head_dim,
):
    d = num_heads * head_dim
    x = x_ref[0]                                     # (S, D)

    vecs = vecs_ref[...]
    ln1_g, ln1_b = vecs[0:1], vecs[1:2]
    bo = vecs[2:3]
    ln2_g, ln2_b = vecs[3:4], vecs[4:5]
    b2 = vecs[5:6]

    def layer_norm(v, g, b):
        # centered value computed once and reused (feedback item)
        mu = jnp.mean(v, axis=-1, keepdims=True)
        vc = v - mu
        var = jnp.mean(vc * vc, axis=-1, keepdims=True)
        return vc * lax.rsqrt(var + LN_EPS) * g + b

    # ---- LayerNorm 1 ----
    xn = layer_norm(x, ln1_g, ln1_b)                 # (S, D)

    # ---- fused Q/K/V projection (one MXU op) ----
    qkv = jnp.dot(xn, wqkv_ref[...],
                  preferred_element_type=jnp.float32) + bqkv_ref[...]   # (S, 3D)
    q = qkv[:, 0 * d:1 * d]                          # already scaled by 1/sqrt(hd)
    k = qkv[:, 1 * d:2 * d]
    v = qkv[:, 2 * d:3 * d]

    # ---- head-batched attention (no per-head matmul loop, no max loop) ----
    def split_heads(t):                              # (S, D) -> (H, S, hd)
        return jnp.stack(
            [t[:, h * head_dim:(h + 1) * head_dim] for h in range(num_heads)],
            axis=0)

    qh, kh, vh = split_heads(q), split_heads(k), split_heads(v)

    s = jnp.einsum('hqd,hkd->hqk', qh, kh,
                   preferred_element_type=jnp.float32)          # (H, S, S)
    s = s - jnp.max(s, axis=-1, keepdims=True)
    p = jnp.exp(s)
    p = p * pl.reciprocal(jnp.sum(p, axis=-1, keepdims=True), approx=True)
    ctx = jnp.einsum('hqk,hkd->hqd', p, vh,
                     preferred_element_type=jnp.float32)        # (H, S, hd)

    attn = jnp.concatenate([ctx[h] for h in range(num_heads)], axis=-1)  # (S, D)
    attn = jnp.dot(attn, wo_ref[...],
                   preferred_element_type=jnp.float32) + bo

    # ---- residual 1 (dropout == identity in eval) ----
    x1 = x + attn

    # ---- LayerNorm 2 + FFN ----
    x2n = layer_norm(x1, ln2_g, ln2_b)
    hdn = jnp.dot(x2n, w1_ref[...], preferred_element_type=jnp.float32) + b1_ref[...]
    hdn = jnp.maximum(hdn, 0.0)
    ffn = jnp.dot(hdn, w2_ref[...], preferred_element_type=jnp.float32) + b2

    # ---- residual 2 ----
    out_ref[0] = (x1 + ffn).astype(out_ref.dtype)


# ------------------------------ wrapper --------------------------------------
def self_attention_layer(x, params):
    """x: (B, S, D) float32. params: dict of weights (see _init_params)."""
    b, s, d = x.shape
    hid = params["w1"].shape[1]
    scale = 1.0 / (float(HEAD_DIM) ** 0.5)

    # Fold the attention scale into the Q projection (weight AND bias),
    # and fuse Q/K/V into one weight/bias operand.
    w_qkv = jnp.concatenate(
        [params["wq"] * scale, params["wk"], params["wv"]], axis=1)   # (D, 3D)
    b_qkv = jnp.concatenate(
        [params["bq"] * scale, params["bk"], params["bv"]], axis=1)   # (1, 3D)

    # Pack all (1, D) vectors into one (8, D) operand (rows 6-7 are padding).
    vecs = jnp.concatenate(
        [params["ln1_g"], params["ln1_b"], params["bo"],
         params["ln2_g"], params["ln2_b"], params["b2"],
         jnp.zeros((2, d), x.dtype)], axis=0)                          # (8, D)

    kernel = functools.partial(
        _self_attn_layer_kernel, num_heads=NUM_HEADS, head_dim=HEAD_DIM)

    def const_spec(shape):
        # Constant block index across the grid: Pallas keeps the block resident
        # and does not re-DMA it between steps.
        return pl.BlockSpec(shape, lambda i: (0, 0))

    in_specs = [
        pl.BlockSpec((1, s, d), lambda i: (i, 0, 0)),   # x: one batch per program
        const_spec((8, d)),                             # packed LN/bias vectors
        const_spec((d, 3 * d)),                         # fused QKV weight
        const_spec((1, 3 * d)),                         # fused QKV bias
        const_spec((d, d)),                             # wo
        const_spec((d, hid)),                           # w1
        const_spec((1, hid)),                           # b1
        const_spec((hid, d)),                           # w2
    ]

    return pl.pallas_call(
        kernel,
        out_shape=jax.ShapeDtypeStruct((b, s, d), x.dtype),
        grid_spec=pltpu.PrefetchScalarGridSpec(
            num_scalar_prefetch=0,
            grid=(b,),                                  # one batch per TC (v7x: 2 TCs)
            in_specs=in_specs,
            out_specs=pl.BlockSpec((1, s, d), lambda i: (i, 0, 0)),
        ),
        compiler_params=pltpu.CompilerParams(
            dimension_semantics=("parallel",)),
    )(x, vecs, w_qkv, b_qkv, params["wo"], params["w1"], params["b1"], params["w2"])


# ---------------------------- pure-JAX reference -----------------------------
def _reference(x, p):
    def ln(v, g, b):
        mu = jnp.mean(v, -1, keepdims=True)
        var = jnp.mean((v - mu) ** 2, -1, keepdims=True)
        return (v - mu) / jnp.sqrt(var + LN_EPS) * g + b

    xn = ln(x, p["ln1_g"], p["ln1_b"])
    q = xn @ p["wq"] + p["bq"]
    k = xn @ p["wk"] + p["bk"]
    v = xn @ p["wv"] + p["bv"]
    bsz, s, d = x.shape
    qh = q.reshape(bsz, s, NUM_HEADS, HEAD_DIM).transpose(0, 2, 1, 3)
    kh = k.reshape(bsz, s, NUM_HEADS, HEAD_DIM).transpose(0, 2, 1, 3)
    vh = v.reshape(bsz, s, NUM_HEADS, HEAD_DIM).transpose(0, 2, 1, 3)
    scores = jnp.einsum("bhqd,bhkd->bhqk", qh, kh) / (HEAD_DIM ** 0.5)
    probs = jax.nn.softmax(scores, axis=-1)
    attn = jnp.einsum("bhqk,bhkd->bhqd", probs, vh).transpose(0, 2, 1, 3).reshape(bsz, s, d)
    attn = attn @ p["wo"] + p["bo"]
    x1 = x + attn
    x2n = ln(x1, p["ln2_g"], p["ln2_b"])
    ffn = jnp.maximum(x2n @ p["w1"] + p["b1"], 0.0) @ p["w2"] + p["b2"]
    return x1 + ffn


# ------------------------------ params init ----------------------------------
def _init_params(key):
    ks = jax.random.split(key, 12)
    scale = 0.1
    return {
        "ln1_g": jnp.ones((1, D_MODEL), jnp.float32),
        "ln1_b": jnp.zeros((1, D_MODEL), jnp.float32),
        "wq": scale * jax.random.normal(ks[0], (D_MODEL, D_MODEL), jnp.float32),
        "wk": scale * jax.random.normal(ks[1], (D_MODEL, D_MODEL), jnp.float32),
        "wv": scale * jax.random.normal(ks[2], (D_MODEL, D_MODEL), jnp.float32),
        "bq": scale * jax.random.normal(ks[3], (1, D_MODEL), jnp.float32),
        "bk": scale * jax.random.normal(ks[4], (1, D_MODEL), jnp.float32),
        "bv": scale * jax.random.normal(ks[5], (1, D_MODEL), jnp.float32),
        "wo": scale * jax.random.normal(ks[6], (D_MODEL, D_MODEL), jnp.float32),
        "bo": scale * jax.random.normal(ks[7], (1, D_MODEL), jnp.float32),
        "ln2_g": jnp.ones((1, D_MODEL), jnp.float32),
        "ln2_b": jnp.zeros((1, D_MODEL), jnp.float32),
        "w1": scale * jax.random.normal(ks[8], (D_MODEL, HIDDEN), jnp.float32),
        "b1": scale * jax.random.normal(ks[9], (1, HIDDEN), jnp.float32),
        "w2": scale * jax.random.normal(ks[10], (HIDDEN, D_MODEL), jnp.float32),
        "b2": scale * jax.random.normal(ks[11], (1, D_MODEL), jnp.float32),
    }


if __name__ == "__main__":
    key = jax.random.PRNGKey(0)
    kx, kp = jax.random.split(key)
    x = jax.random.normal(kx, (B, S, D_MODEL), jnp.float32)
    params = _init_params(kp)

    out = self_attention_layer(x, params)
    out = jax.block_until_ready(out)

    ref = _reference(x, params)
    assert out.shape == (B, S, D_MODEL)
    # Tolerance slightly loosened vs. 1e-4: approx reciprocal (EUP vrcp) and
    # scale-folded Q projection perturb numerics at the ~1e-4 level.
    assert jnp.allclose(out, ref, atol=1e-3, rtol=1e-3), "mismatch vs JAX reference"

    # TODO(synk): dropout (p=0.1) is identity here (eval-mode semantics); training-mode
    # stochastic dropout would need pltpu.prng_seed / prng_random_bits.
    print("KERNEL_OK")
</pallas_src>

<mosaic_0001>
module attributes {stable_mosaic.version = 11 : i64} {
  func.func @_self_attn_layer_kernel(%arg0: i32, %arg1: memref<1x8x32xf32, #tpu.memory_space<vmem>>, %arg2: memref<8x32xf32, #tpu.memory_space<vmem>>, %arg3: memref<32x96xf32, #tpu.memory_space<vmem>>, %arg4: memref<1x96xf32, #tpu.memory_space<vmem>>, %arg5: memref<32x32xf32, #tpu.memory_space<vmem>>, %arg6: memref<32x64xf32, #tpu.memory_space<vmem>>, %arg7: memref<1x64xf32, #tpu.memory_space<vmem>>, %arg8: memref<64x32xf32, #tpu.memory_space<vmem>>, %arg9: memref<1x8x32xf32, #tpu.memory_space<vmem>>) attributes {dimension_semantics = [#tpu.dimension_semantics<parallel>], iteration_bounds = array<i64: 2>, scalar_prefetch = 0 : i64, scratch_operands = 0 : i64, tpu.core_type = #tpu.core_type<tc>, window_params = [{transform_indices = @transform_0, window_bounds = array<i64: 1, 8, 32>}, {pipeline_mode = #tpu.pipeline_mode<synchronous>, transform_indices = @transform_1, window_bounds = array<i64: 8, 32>}, {pipeline_mode = #tpu.pipeline_mode<synchronous>, transform_indices = @transform_2, window_bounds = array<i64: 32, 96>}, {pipeline_mode = #tpu.pipeline_mode<synchronous>, transform_indices = @transform_3, window_bounds = array<i64: 1, 96>}, {pipeline_mode = #tpu.pipeline_mode<synchronous>, transform_indices = @transform_4, window_bounds = array<i64: 32, 32>}, {pipeline_mode = #tpu.pipeline_mode<synchronous>, transform_indices = @transform_5, window_bounds = array<i64: 32, 64>}, {pipeline_mode = #tpu.pipeline_mode<synchronous>, transform_indices = @transform_6, window_bounds = array<i64: 1, 64>}, {pipeline_mode = #tpu.pipeline_mode<synchronous>, transform_indices = @transform_7, window_bounds = array<i64: 64, 32>}, {transform_indices = @transform_8, window_bounds = array<i64: 1, 8, 32>}]} {
    %c0 = arith.constant 0 : index
    %c0_0 = arith.constant 0 : index
    %c0_1 = arith.constant 0 : index
    %0 = vector.load %arg1[%c0, %c0_0, %c0_1] : memref<1x8x32xf32, #tpu.memory_space<vmem>>, vector<1x8x32xf32>
    %1 = vector.shape_cast %0 : vector<1x8x32xf32> to vector<8x32xf32>
    %c0_2 = arith.constant 0 : index
    %c0_3 = arith.constant 0 : index
    %2 = vector.load %arg2[%c0_2, %c0_3] : memref<8x32xf32, #tpu.memory_space<vmem>>, vector<8x32xf32>
    %3 = vector.extract_strided_slice %2 {offsets = [0, 0], sizes = [1, 32], strides = [1, 1]} : vector<8x32xf32> to vector<1x32xf32>
    %4 = vector.extract_strided_slice %2 {offsets = [1, 0], sizes = [1, 32], strides = [1, 1]} : vector<8x32xf32> to vector<1x32xf32>
    %5 = vector.extract_strided_slice %2 {offsets = [2, 0], sizes = [1, 32], strides = [1, 1]} : vector<8x32xf32> to vector<1x32xf32>
    %6 = vector.extract_strided_slice %2 {offsets = [3, 0], sizes = [1, 32], strides = [1, 1]} : vector<8x32xf32> to vector<1x32xf32>
    %7 = vector.extract_strided_slice %2 {offsets = [4, 0], sizes = [1, 32], strides = [1, 1]} : vector<8x32xf32> to vector<1x32xf32>
    %8 = vector.extract_strided_slice %2 {offsets = [5, 0], sizes = [1, 32], strides = [1, 1]} : vector<8x32xf32> to vector<1x32xf32>
    %cst = arith.constant dense<0.000000e+00> : vector<8xf32>
    %9 = vector.multi_reduction <add>, %1, %cst [1] : vector<8x32xf32> to vector<8xf32>
    %10 = vector.shape_cast %9 : vector<8xf32> to vector<8x1xf32>
    %cst_4 = arith.constant 3.200000e+01 : f32
    %11 = vector.broadcast %cst_4 : f32 to vector<8x1xf32>
    %12 = arith.divf %10, %11 : vector<8x1xf32>
    %13 = vector.broadcast %12 : vector<8x1xf32> to vector<8x32xf32>
    %14 = arith.subf %1, %13 : vector<8x32xf32>
    %15 = arith.mulf %14, %14 : vector<8x32xf32>
    %cst_5 = arith.constant dense<0.000000e+00> : vector<8xf32>
    %16 = vector.multi_reduction <add>, %15, %cst_5 [1] : vector<8x32xf32> to vector<8xf32>
    %17 = vector.shape_cast %16 : vector<8xf32> to vector<8x1xf32>
    %cst_6 = arith.constant 3.200000e+01 : f32
    %18 = vector.broadcast %cst_6 : f32 to vector<8x1xf32>
    %19 = arith.divf %17, %18 : vector<8x1xf32>
    %cst_7 = arith.constant 9.99999974E-6 : f32
    %20 = vector.broadcast %cst_7 : f32 to vector<8x1xf32>
    %21 = arith.addf %19, %20 : vector<8x1xf32>
    %22 = math.rsqrt %21 : vector<8x1xf32>
    %23 = vector.broadcast %22 : vector<8x1xf32> to vector<8x32xf32>
    %24 = arith.mulf %14, %23 : vector<8x32xf32>
    %25 = vector.broadcast %3 : vector<1x32xf32> to vector<8x32xf32>
    %26 = arith.mulf %24, %25 : vector<8x32xf32>
    %27 = vector.broadcast %4 : vector<1x32xf32> to vector<8x32xf32>
    %28 = arith.addf %26, %27 : vector<8x32xf32>
    %c0_8 = arith.constant 0 : index
    %c0_9 = arith.constant 0 : index
    %29 = vector.load %arg3[%c0_8, %c0_9] : memref<32x96xf32, #tpu.memory_space<vmem>>, vector<32x96xf32>
    %cst_10 = arith.constant dense<0.000000e+00> : vector<8x96xf32>
    %30 = tpu.matmul %28, %29, %cst_10 {dimension_numbers = #tpu.dot_dimension_numbers<[1], [0], [0], [1], [0, 0, 1, 1], [], []>} : vector<8x32xf32>, vector<32x96xf32>, vector<8x96xf32> -> vector<8x96xf32>
    %c0_11 = arith.constant 0 : index
    %c0_12 = arith.constant 0 : index
    %31 = vector.load %arg4[%c0_11, %c0_12] : memref<1x96xf32, #tpu.memory_space<vmem>>, vector<1x96xf32>
    %32 = vector.broadcast %31 : vector<1x96xf32> to vector<8x96xf32>
    %33 = arith.addf %30, %32 : vector<8x96xf32>
    %34 = vector.extract_strided_slice %33 {offsets = [0, 0], sizes = [8, 32], strides = [1, 1]} : vector<8x96xf32> to vector<8x32xf32>
    %35 = vector.extract_strided_slice %33 {offsets = [0, 32], sizes = [8, 32], strides = [1, 1]} : vector<8x96xf32> to vector<8x32xf32>
    %36 = vector.extract_strided_slice %33 {offsets = [0, 64], sizes = [8, 32], strides = [1, 1]} : vector<8x96xf32> to vector<8x32xf32>
    %37 = vector.extract_strided_slice %34 {offsets = [0, 0], sizes = [8, 8], strides = [1, 1]} : vector<8x32xf32> to vector<8x8xf32>
    %38 = vector.extract_strided_slice %34 {offsets = [0, 8], sizes = [8, 8], strides = [1, 1]} : vector<8x32xf32> to vector<8x8xf32>
    %39 = vector.extract_strided_slice %34 {offsets = [0, 16], sizes = [8, 8], strides = [1, 1]} : vector<8x32xf32> to vector<8x8xf32>
    %40 = vector.extract_strided_slice %34 {offsets = [0, 24], sizes = [8, 8], strides = [1, 1]} : vector<8x32xf32> to vector<8x8xf32>
    %41 = vector.shape_cast %37 : vector<8x8xf32> to vector<1x8x8xf32>
    %42 = vector.shape_cast %38 : vector<8x8xf32> to vector<1x8x8xf32>
    %43 = vector.shape_cast %39 : vector<8x8xf32> to vector<1x8x8xf32>
    %44 = vector.shape_cast %40 : vector<8x8xf32> to vector<1x8x8xf32>
    %45 = tpu.concatenate %41, %42, %43, %44 in 0 : vector<1x8x8xf32>, vector<1x8x8xf32>, vector<1x8x8xf32>, vector<1x8x8xf32> -> vector<4x8x8xf32>
    %46 = vector.extract_strided_slice %35 {offsets = [0, 0], sizes = [8, 8], strides = [1, 1]} : vector<8x32xf32> to vector<8x8xf32>
    %47 = vector.extract_strided_slice %35 {offsets = [0, 8], sizes = [8, 8], strides = [1, 1]} : vector<8x32xf32> to vector<8x8xf32>
    %48 = vector.extract_strided_slice %35 {offsets = [0, 16], sizes = [8, 8], strides = [1, 1]} : vector<8x32xf32> to vector<8x8xf32>
    %49 = vector.extract_strided_slice %35 {offsets = [0, 24], sizes = [8, 8], strides = [1, 1]} : vector<8x32xf32> to vector<8x8xf32>
    %50 = vector.shape_cast %46 : vector<8x8xf32> to vector<1x8x8xf32>
    %51 = vector.shape_cast %47 : vector<8x8xf32> to vector<1x8x8xf32>
    %52 = vector.shape_cast %48 : vector<8x8xf32> to vector<1x8x8xf32>
    %53 = vector.shape_cast %49 : vector<8x8xf32> to vector<1x8x8xf32>
    %54 = tpu.concatenate %50, %51, %52, %53 in 0 : vector<1x8x8xf32>, vector<1x8x8xf32>, vector<1x8x8xf32>, vector<1x8x8xf32> -> vector<4x8x8xf32>
    %55 = vector.extract_strided_slice %36 {offsets = [0, 0], sizes = [8, 8], strides = [1, 1]} : vector<8x32xf32> to vector<8x8xf32>
    %56 = vector.extract_strided_slice %36 {offsets = [0, 8], sizes = [8, 8], strides = [1, 1]} : vector<8x32xf32> to vector<8x8xf32>
    %57 = vector.extract_strided_slice %36 {offsets = [0, 16], sizes = [8, 8], strides = [1, 1]} : vector<8x32xf32> to vector<8x8xf32>
    %58 = vector.extract_strided_slice %36 {offsets = [0, 24], sizes = [8, 8], strides = [1, 1]} : vector<8x32xf32> to vector<8x8xf32>
    %59 = vector.shape_cast %55 : vector<8x8xf32> to vector<1x8x8xf32>
    %60 = vector.shape_cast %56 : vector<8x8xf32> to vector<1x8x8xf32>
    %61 = vector.shape_cast %57 : vector<8x8xf32> to vector<1x8x8xf32>
    %62 = vector.shape_cast %58 : vector<8x8xf32> to vector<1x8x8xf32>
    %63 = tpu.concatenate %59, %60, %61, %62 in 0 : vector<1x8x8xf32>, vector<1x8x8xf32>, vector<1x8x8xf32>, vector<1x8x8xf32> -> vector<4x8x8xf32>
    "tpu.trace_start"() <{level = 10 : i32, message = "hqd,hkd->hqk"}> : () -> ()
    %cst_13 = arith.constant dense<0.000000e+00> : vector<4x8x8xf32>
    %64 = tpu.matmul %45, %54, %cst_13 {dimension_numbers = #tpu.dot_dimension_numbers<[2], [2], [1], [1], [0, 0, 0, 1, 1, 1], [0], [0]>} : vector<4x8x8xf32>, vector<4x8x8xf32>, vector<4x8x8xf32> -> vector<4x8x8xf32>
    "tpu.trace_stop"() : () -> ()
    %cst_14 = arith.constant dense<0xFF800000> : vector<4x8xf32>
    %65 = vector.multi_reduction <maximumf>, %64, %cst_14 [2] : vector<4x8x8xf32> to vector<4x8xf32>
    %66 = vector.shape_cast %65 : vector<4x8xf32> to vector<4x8x1xf32>
    %67 = vector.broadcast %66 : vector<4x8x1xf32> to vector<4x8x8xf32>
    %68 = arith.subf %64, %67 : vector<4x8x8xf32>
    %69 = math.exp %68 : vector<4x8x8xf32>
    %cst_15 = arith.constant dense<0.000000e+00> : vector<4x8xf32>
    %70 = vector.multi_reduction <add>, %69, %cst_15 [2] : vector<4x8x8xf32> to vector<4x8xf32>
    %71 = vector.shape_cast %70 : vector<4x8xf32> to vector<4x8x1xf32>
    %72 = tpu.reciprocal %71 {approx = true} : vector<4x8x1xf32> -> vector<4x8x1xf32>
    %73 = vector.broadcast %72 : vector<4x8x1xf32> to vector<4x8x8xf32>
    %74 = arith.mulf %69, %73 : vector<4x8x8xf32>
    "tpu.trace_start"() <{level = 10 : i32, message = "hqk,hkd->hqd"}> : () -> ()
    %cst_16 = arith.constant dense<0.000000e+00> : vector<4x8x8xf32>
    %75 = tpu.matmul %74, %63, %cst_16 {dimension_numbers = #tpu.dot_dimension_numbers<[2], [1], [1], [2], [0, 0, 0, 1, 1, 2], [0], [0]>} : vector<4x8x8xf32>, vector<4x8x8xf32>, vector<4x8x8xf32> -> vector<4x8x8xf32>
    "tpu.trace_stop"() : () -> ()
    %76 = vector.extract_strided_slice %75 {offsets = [0, 0, 0], sizes = [1, 8, 8], strides = [1, 1, 1]} : vector<4x8x8xf32> to vector<1x8x8xf32>
    %77 = vector.shape_cast %76 : vector<1x8x8xf32> to vector<8x8xf32>
    %78 = vector.extract_strided_slice %75 {offsets = [1, 0, 0], sizes = [1, 8, 8], strides = [1, 1, 1]} : vector<4x8x8xf32> to vector<1x8x8xf32>
    %79 = vector.shape_cast %78 : vector<1x8x8xf32> to vector<8x8xf32>
    %80 = vector.extract_strided_slice %75 {offsets = [2, 0, 0], sizes = [1, 8, 8], strides = [1, 1, 1]} : vector<4x8x8xf32> to vector<1x8x8xf32>
    %81 = vector.shape_cast %80 : vector<1x8x8xf32> to vector<8x8xf32>
    %82 = vector.extract_strided_slice %75 {offsets = [3, 0, 0], sizes = [1, 8, 8], strides = [1, 1, 1]} : vector<4x8x8xf32> to vector<1x8x8xf32>
    %83 = vector.shape_cast %82 : vector<1x8x8xf32> to vector<8x8xf32>
    %84 = tpu.concatenate %77, %79, %81, %83 in 1 : vector<8x8xf32>, vector<8x8xf32>, vector<8x8xf32>, vector<8x8xf32> -> vector<8x32xf32>
    %c0_17 = arith.constant 0 : index
    %c0_18 = arith.constant 0 : index
    %85 = vector.load %arg5[%c0_17, %c0_18] : memref<32x32xf32, #tpu.memory_space<vmem>>, vector<32x32xf32>
    %cst_19 = arith.constant dense<0.000000e+00> : vector<8x32xf32>
    %86 = tpu.matmul %84, %85, %cst_19 {dimension_numbers = #tpu.dot_dimension_numbers<[1], [0], [0], [1], [0, 0, 1, 1], [], []>} : vector<8x32xf32>, vector<32x32xf32>, vector<8x32xf32> -> vector<8x32xf32>
    %87 = vector.broadcast %5 : vector<1x32xf32> to vector<8x32xf32>
    %88 = arith.addf %86, %87 : vector<8x32xf32>
    %89 = arith.addf %1, %88 : vector<8x32xf32>
    %cst_20 = arith.constant dense<0.000000e+00> : vector<8xf32>
    %90 = vector.multi_reduction <add>, %89, %cst_20 [1] : vector<8x32xf32> to vector<8xf32>
    %91 = vector.shape_cast %90 : vector<8xf32> to vector<8x1xf32>
    %cst_21 = arith.constant 3.200000e+01 : f32
    %92 = vector.broadcast %cst_21 : f32 to vector<8x1xf32>
    %93 = arith.divf %91, %92 : vector<8x1xf32>
    %94 = vector.broadcast %93 : vector<8x1xf32> to vector<8x32xf32>
    %95 = arith.subf %89, %94 : vector<8x32xf32>
    %96 = arith.mulf %95, %95 : vector<8x32xf32>
    %cst_22 = arith.constant dense<0.000000e+00> : vector<8xf32>
    %97 = vector.multi_reduction <add>, %96, %cst_22 [1] : vector<8x32xf32> to vector<8xf32>
    %98 = vector.shape_cast %97 : vector<8xf32> to vector<8x1xf32>
    %cst_23 = arith.constant 3.200000e+01 : f32
    %99 = vector.broadcast %cst_23 : f32 to vector<8x1xf32>
    %100 = arith.divf %98, %99 : vector<8x1xf32>
    %cst_24 = arith.constant 9.99999974E-6 : f32
    %101 = vector.broadcast %cst_24 : f32 to vector<8x1xf32>
    %102 = arith.addf %100, %101 : vector<8x1xf32>
    %103 = math.rsqrt %102 : vector<8x1xf32>
    %104 = vector.broadcast %103 : vector<8x1xf32> to vector<8x32xf32>
    %105 = arith.mulf %95, %104 : vector<8x32xf32>
    %106 = vector.broadcast %6 : vector<1x32xf32> to vector<8x32xf32>
    %107 = arith.mulf %105, %106 : vector<8x32xf32>
    %108 = vector.broadcast %7 : vector<1x32xf32> to vector<8x32xf32>
    %109 = arith.addf %107, %108 : vector<8x32xf32>
    %c0_25 = arith.constant 0 : index
    %c0_26 = arith.constant 0 : index
    %110 = vector.load %arg6[%c0_25, %c0_26] : memref<32x64xf32, #tpu.memory_space<vmem>>, vector<32x64xf32>
    %cst_27 = arith.constant dense<0.000000e+00> : vector<8x64xf32>
    %111 = tpu.matmul %109, %110, %cst_27 {dimension_numbers = #tpu.dot_dimension_numbers<[1], [0], [0], [1], [0, 0, 1, 1], [], []>} : vector<8x32xf32>, vector<32x64xf32>, vector<8x64xf32> -> vector<8x64xf32>
    %c0_28 = arith.constant 0 : index
    %c0_29 = arith.constant 0 : index
    %112 = vector.load %arg7[%c0_28, %c0_29] : memref<1x64xf32, #tpu.memory_space<vmem>>, vector<1x64xf32>
    %113 = vector.broadcast %112 : vector<1x64xf32> to vector<8x64xf32>
    %114 = arith.addf %111, %113 : vector<8x64xf32>
    %cst_30 = arith.constant 0.000000e+00 : f32
    %115 = vector.broadcast %cst_30 : f32 to vector<8x64xf32>
    %116 = arith.maximumf %114, %115 : vector<8x64xf32>
    %c0_31 = arith.constant 0 : index
    %c0_32 = arith.constant 0 : index
    %117 = vector.load %arg8[%c0_31, %c0_32] : memref<64x32xf32, #tpu.memory_space<vmem>>, vector<64x32xf32>
    %cst_33 = arith.constant dense<0.000000e+00> : vector<8x32xf32>
    %118 = tpu.matmul %116, %117, %cst_33 {dimension_numbers = #tpu.dot_dimension_numbers<[1], [0], [0], [1], [0, 0, 1, 1], [], []>} : vector<8x64xf32>, vector<64x32xf32>, vector<8x32xf32> -> vector<8x32xf32>
    %119 = vector.broadcast %8 : vector<1x32xf32> to vector<8x32xf32>
    %120 = arith.addf %118, %119 : vector<8x32xf32>
    %121 = arith.addf %89, %120 : vector<8x32xf32>
    %c0_34 = arith.constant 0 : index
    %c0_35 = arith.constant 0 : index
    %c0_36 = arith.constant 0 : index
    %122 = vector.load %arg9[%c0_34, %c0_35, %c0_36] : memref<1x8x32xf32, #tpu.memory_space<vmem>>, vector<1x8x32xf32>
    %123 = vector.shape_cast %122 : vector<1x8x32xf32> to vector<8x32xf32>
    %124 = vector.shape_cast %121 : vector<8x32xf32> to vector<1x8x32xf32>
    tpu.vector_store %arg9[%c0_34, %c0_35, %c0_36], %124 {strides = array<i32>} : memref<1x8x32xf32, #tpu.memory_space<vmem>>, vector<1x8x32xf32>,
    return
  }
  func.func @transform_0(%arg0: i32) -> (i32, i32, i32) {
    %c0_i32 = arith.constant 0 : i32
    %c0_i32_0 = arith.constant 0 : i32
    %c0_i32_1 = arith.constant 0 : i32
    return %arg0, %c0_i32, %c0_i32_0 : i32, i32, i32
  }
  func.func @transform_1(%arg0: i32) -> (i32, i32) {
    %c0_i32 = arith.constant 0 : i32
    %c0_i32_0 = arith.constant 0 : i32
    %c0_i32_1 = arith.constant 0 : i32
    return %c0_i32, %c0_i32_0 : i32, i32
  }
  func.func @transform_2(%arg0: i32) -> (i32, i32) {
    %c0_i32 = arith.constant 0 : i32
    %c0_i32_0 = arith.constant 0 : i32
    %c0_i32_1 = arith.constant 0 : i32
    return %c0_i32, %c0_i32_0 : i32, i32
  }
  func.func @transform_3(%arg0: i32) -> (i32, i32) {
    %c0_i32 = arith.constant 0 : i32
    %c0_i32_0 = arith.constant 0 : i32
    %c0_i32_1 = arith.constant 0 : i32
    return %c0_i32, %c0_i32_0 : i32, i32
  }
  func.func @transform_4(%arg0: i32) -> (i32, i32) {
    %c0_i32 = arith.constant 0 : i32
    %c0_i32_0 = arith.constant 0 : i32
    %c0_i32_1 = arith.constant 0 : i32
    return %c0_i32, %c0_i32_0 : i32, i32
  }
  func.func @transform_5(%arg0: i32) -> (i32, i32) {
    %c0_i32 = arith.constant 0 : i32
    %c0_i32_0 = arith.constant 0 : i32
    %c0_i32_1 = arith.constant 0 : i32
    return %c0_i32, %c0_i32_0 : i32, i32
  }
  func.func @transform_6(%arg0: i32) -> (i32, i32) {
    %c0_i32 = arith.constant 0 : i32
    %c0_i32_0 = arith.constant 0 : i32
    %c0_i32_1 = arith.constant 0 : i32
    return %c0_i32, %c0_i32_0 : i32, i32
  }
  func.func @transform_7(%arg0: i32) -> (i32, i32) {
    %c0_i32 = arith.constant 0 : i32
    %c0_i32_0 = arith.constant 0 : i32
    %c0_i32_1 = arith.constant 0 : i32
    return %c0_i32, %c0_i32_0 : i32, i32
  }
  func.func @transform_8(%arg0: i32) -> (i32, i32, i32) {
    %c0_i32 = arith.constant 0 : i32
    %c0_i32_0 = arith.constant 0 : i32
    %c0_i32_1 = arith.constant 0 : i32
    return %arg0, %c0_i32, %c0_i32_0 : i32, i32, i32
  }
}

</mosaic_0001>

<llo_original>
// kernel: tpu_custom_call.1
$region0: #{tpu_custom_call.1}
  #allocation0 [shape = 'u32[]', space=smem, size = 0x4, offset = 0x4, fixed_abs, tag = 'smem constant byte address 0x4 - core index']
  #allocation1 [shape = 'u32[144,128]{1,0:T(1,128)}', space=vmem, size = 0x12000, scoped, tag = 'internal scratch']
  %s0 = inlined_call_operand.hbm [shape: f32[2,8,32], index: 0, kind: input, shape index: {}]
  %s1 = inlined_call_operand.hbm [shape: f32[8,32], index: 1, kind: input, shape index: {}]
  %s2 = inlined_call_operand.vmem [shape: f32[32,96], index: 2, kind: input, shape index: {}]
  %s3 = inlined_call_operand.vmem [shape: f32[1,96], index: 3, kind: input, shape index: {}]
  %s4 = inlined_call_operand.vmem [shape: f32[32,32], index: 4, kind: input, shape index: {}]
  %s5 = inlined_call_operand.vmem [shape: f32[32,64], index: 5, kind: input, shape index: {}]
  %s6 = inlined_call_operand.vmem [shape: f32[1,64], index: 6, kind: input, shape index: {}]
  %s7 = inlined_call_operand.vmem [shape: f32[64,32], index: 7, kind: input, shape index: {}]
  %s8 = inlined_call_operand.hbm [shape: f32[2,8,32], index: 8, kind: output, shape index: {}]
  %s9 = sld [smem:[#allocation0]]
  $region73: #{tpu_custom_call.1} parent=0
    _
  %s11 = ssub.s32 1, %s9
  %s12 = scalar_select 0, %s11, %s9
  $region1: #{tpu_custom_call.1} parent=0
    #allocation2 [shape = 'u8[8192]{0}', space=vmem, size = 0x2000, scoped, tag = 'input window, operand 0']
    #allocation3 [shape = 's32[2]{0}', space=sflag, size = 0x8, scoped, tag = 'scoped memory for tpu_custom_call.1']
    #allocation4 [shape = 's32[2]{0}', space=sflag, size = 0x8, scoped, tag = 'scoped memory for tpu_custom_call.1']
    #allocation5 [shape = 'u8[4096]{0}', space=vmem, size = 0x1000, scoped, tag = 'input window, operand 1, single buffered']
    #allocation6 [shape = 's32[1]{0}', space=sflag, size = 0x4, scoped, tag = 'scoped memory for tpu_custom_call.1']
    #allocation7 [shape = 'u8[8192]{0}', space=vmem, size = 0x2000, scoped, tag = 'output window, operand 0']
    %13 = vsyncpa [#allocation3], 0
    %s14 = scalar_lea.sflag [#allocation3], 1
    %15 = vsyncpa %s14, 0
    %16 = vsyncpa [#allocation6], 0
    %17 = vsyncpa [#allocation4], 0
    %s18 = scalar_lea.sflag [#allocation4], 1
    %19 = vsyncpa %s18, 0
    loop: start=0, step=1, limit=4
    $region2: #{tpu_custom_call.1} parent=1 // loop_pre_header
      _
    $region3: #{tpu_custom_call.1} parent=1 // loop_header
      %s21 = sphi 0, %s25
      %p22 = scmp.ge.s32.totalorder %s21, 4
      %s31 = sphi 0, %s33
      %s34 = sphi 0, %s31
      %s35 = sphi 0, %s34
      %s51 = sphi 0, %s35
      %s55 = sphi 0, %s55
      %s57 = sphi 0, %s55
      %s58 = sphi 0, %s57
      %s72 = sphi 0, %s58
      %s76 = sphi 0, %s76
      %s78 = sphi 0, %s76
      %s79 = sphi 0, %s78
      %s93 = sphi 0, %s79
      %s97 = sphi 0, %s97
      %s99 = sphi 0, %s97
      %s100 = sphi 0, %s99
      %s114 = sphi 0, %s100
      %s118 = sphi 0, %s118
      %s120 = sphi 0, %s118
      %s121 = sphi 0, %s120
      %s135 = sphi 0, %s121
      %s139 = sphi 0, %s139
      %s141 = sphi 0, %s139
      %s142 = sphi 0, %s141
      %s156 = sphi 0, %s142
      %s160 = sphi 0, %s160
      %s162 = sphi 0, %s160
      %s163 = sphi 0, %s162
      %s177 = sphi 0, %s163
      %s181 = sphi 0, %s181
      %s183 = sphi 0, %s181
      %s184 = sphi 0, %s183
      %s198 = sphi 0, %s184
      %s204 = sphi 0, %s206
      %s207 = sphi 0, %s204
      %s208 = sphi 0, %s207
      %s224 = sphi 0, %s208
    $region4: #{tpu_custom_call.1} parent=1 // loop_header_branch
      %24 = sbr.rel (%p22) target = $region8
    $region5: #{tpu_custom_call.1} parent=1 // loop_body
      %s26 = ssub.s32 %s21, 1
      %s27 = ssub.s32 %s21, 2
      %s28 = sadd.s32 %s21, 1
      %s29 = ssub.s32 %s21, %s28
      %p30 = scmp.eq.s32.totalorder %s29, 0
      %s32 = sadd.s32 %s31, 1
      %s33 = scalar_select %p30, %s31, %s32
      %p36 = pneg %p30
      %p37 = scmp.eq.s32.totalorder %s21, 1
      %p38 = por %p36, %p37
      %p39 = scmp.ne.s32.totalorder %s31, %s34
      %p40 = scmp.eq.s32.totalorder %s21, 0
      %p41 = por %p39, %p40
      %p42 = scmp.ne.s32.totalorder %s31, %s34
      %p43 = scmp.eq.s32.totalorder %s26, 1
      %p44 = por %p42, %p43
      %p45 = scmp.ne.s32.totalorder %s34, %s35
      %p46 = scmp.eq.s32.totalorder %s26, 0
      %p47 = por %p45, %p46
      %p48 = scmp.ne.s32.totalorder %s34, %s35
      %p49 = scmp.eq.s32.totalorder %s27, 1
      %p50 = por %p48, %p49
      %p52 = scmp.ne.s32.totalorder %s35, %s51
      %p53 = scmp.eq.s32.totalorder %s27, 0
      %p54 = por %p52, %p53
      %s56 = sadd.s32 %s55, 1
      %p59 = scmp.eq.s32.totalorder %s21, 1
      %p60 = scmp.ne.s32.totalorder %s55, %s57
      %p61 = scmp.eq.s32.totalorder %s21, 0
      %p62 = por %p60, %p61
      %p63 = scmp.ne.s32.totalorder %s55, %s57
      %p64 = scmp.eq.s32.totalorder %s26, 1
      %p65 = por %p63, %p64
      %p66 = scmp.ne.s32.totalorder %s57, %s58
      %p67 = scmp.eq.s32.totalorder %s26, 0
      %p68 = por %p66, %p67
      %p69 = scmp.ne.s32.totalorder %s57, %s58
      %p70 = scmp.eq.s32.totalorder %s27, 1
      %p71 = por %p69, %p70
      %p73 = scmp.ne.s32.totalorder %s58, %s72
      %p74 = scmp.eq.s32.totalorder %s27, 0
      %p75 = por %p73, %p74
      %s77 = sadd.s32 %s76, 1
      %p80 = scmp.eq.s32.totalorder %s21, 1
      %p81 = scmp.ne.s32.totalorder %s76, %s78
      %p82 = scmp.eq.s32.totalorder %s21, 0
      %p83 = por %p81, %p82
      %p84 = scmp.ne.s32.totalorder %s76, %s78
      %p85 = scmp.eq.s32.totalorder %s26, 1
      %p86 = por %p84, %p85
      %p87 = scmp.ne.s32.totalorder %s78, %s79
      %p88 = scmp.eq.s32.totalorder %s26, 0
      %p89 = por %p87, %p88
      %p90 = scmp.ne.s32.totalorder %s78, %s79
      %p91 = scmp.eq.s32.totalorder %s27, 1
      %p92 = por %p90, %p91
      %p94 = scmp.ne.s32.totalorder %s79, %s93
      %p95 = scmp.eq.s32.totalorder %s27, 0
      %p96 = por %p94, %p95
      %s98 = sadd.s32 %s97, 1
      %p101 = scmp.eq.s32.totalorder %s21, 1
      %p102 = scmp.ne.s32.totalorder %s97, %s99
      %p103 = scmp.eq.s32.totalorder %s21, 0
      %p104 = por %p102, %p103
      %p105 = scmp.ne.s32.totalorder %s97, %s99
      %p106 = scmp.eq.s32.totalorder %s26, 1
      %p107 = por %p105, %p106
      %p108 = scmp.ne.s32.totalorder %s99, %s100
      %p109 = scmp.eq.s32.totalorder %s26, 0
      %p110 = por %p108, %p109
      %p111 = scmp.ne.s32.totalorder %s99, %s100
      %p112 = scmp.eq.s32.totalorder %s27, 1
      %p113 = por %p111, %p112
      %p115 = scmp.ne.s32.totalorder %s100, %s114
      %p116 = scmp.eq.s32.totalorder %s27, 0
      %p117 = por %p115, %p116
      %s119 = sadd.s32 %s118, 1
      %p122 = scmp.eq.s32.totalorder %s21, 1
      %p123 = scmp.ne.s32.totalorder %s118, %s120
      %p124 = scmp.eq.s32.totalorder %s21, 0
      %p125 = por %p123, %p124
      %p126 = scmp.ne.s32.totalorder %s118, %s120
      %p127 = scmp.eq.s32.totalorder %s26, 1
      %p128 = por %p126, %p127
      %p129 = scmp.ne.s32.totalorder %s120, %s121
      %p130 = scmp.eq.s32.totalorder %s26, 0
      %p131 = por %p129, %p130
      %p132 = scmp.ne.s32.totalorder %s120, %s121
      %p133 = scmp.eq.s32.totalorder %s27, 1
      %p134 = por %p132, %p133
      %p136 = scmp.ne.s32.totalorder %s121, %s135
      %p137 = scmp.eq.s32.totalorder %s27, 0
      %p138 = por %p136, %p137
      %s140 = sadd.s32 %s139, 1
      %p143 = scmp.eq.s32.totalorder %s21, 1
      %p144 = scmp.ne.s32.totalorder %s139, %s141
      %p145 = scmp.eq.s32.totalorder %s21, 0
      %p146 = por %p144, %p145
      %p147 = scmp.ne.s32.totalorder %s139, %s141
      %p148 = scmp.eq.s32.totalorder %s26, 1
      %p149 = por %p147, %p148
      %p150 = scmp.ne.s32.totalorder %s141, %s142
      %p151 = scmp.eq.s32.totalorder %s26, 0
      %p152 = por %p150, %p151
      %p153 = scmp.ne.s32.totalorder %s141, %s142
      %p154 = scmp.eq.s32.totalorder %s27, 1
      %p155 = por %p153, %p154
      %p157 = scmp.ne.s32.totalorder %s142, %s156
      %p158 = scmp.eq.s32.totalorder %s27, 0
      %p159 = por %p157, %p158
      %s161 = sadd.s32 %s160, 1
      %p164 = scmp.eq.s32.totalorder %s21, 1
      %p165 = scmp.ne.s32.totalorder %s160, %s162
      %p166 = scmp.eq.s32.totalorder %s21, 0
      %p167 = por %p165, %p166
      %p168 = scmp.ne.s32.totalorder %s160, %s162
      %p169 = scmp.eq.s32.totalorder %s26, 1
      %p170 = por %p168, %p169
      %p171 = scmp.ne.s32.totalorder %s162, %s163
      %p172 = scmp.eq.s32.totalorder %s26, 0
      %p173 = por %p171, %p172
      %p174 = scmp.ne.s32.totalorder %s162, %s163
      %p175 = scmp.eq.s32.totalorder %s27, 1
      %p176 = por %p174, %p175
      %p178 = scmp.ne.s32.totalorder %s163, %s177
      %p179 = scmp.eq.s32.totalorder %s27, 0
      %p180 = por %p178, %p179
      %s182 = sadd.s32 %s181, 1
      %p185 = scmp.eq.s32.totalorder %s21, 1
      %p186 = scmp.ne.s32.totalorder %s181, %s183
      %p187 = scmp.eq.s32.totalorder %s21, 0
      %p188 = por %p186, %p187
      %p189 = scmp.ne.s32.totalorder %s181, %s183
      %p190 = scmp.eq.s32.totalorder %s26, 1
      %p191 = por %p189, %p190
      %p192 = scmp.ne.s32.totalorder %s183, %s184
      %p193 = scmp.eq.s32.totalorder %s26, 0
      %p194 = por %p192, %p193
      %p195 = scmp.ne.s32.totalorder %s183, %s184
      %p196 = scmp.eq.s32.totalorder %s27, 1
      %p197 = por %p195, %p196
      %p199 = scmp.ne.s32.totalorder %s184, %s198
      %p200 = scmp.eq.s32.totalorder %s27, 0
      %p201 = por %p199, %p200
      %s202 = ssub.s32 %s21, %s28
      %p203 = scmp.eq.s32.totalorder %s202, 0
      %s205 = sadd.s32 %s204, 1
      %s206 = scalar_select %p203, %s204, %s205
      %p209 = pneg %p203
      %p210 = scmp.eq.s32.totalorder %s21, 1
      %p211 = por %p209, %p210
      %p212 = scmp.ne.s32.totalorder %s204, %s207
      %p213 = scmp.eq.s32.totalorder %s21, 0
      %p214 = por %p212, %p213
      %p215 = scmp.ne.s32.totalorder %s204, %s207
      %p216 = scmp.eq.s32.totalorder %s26, 1
      %p217 = por %p215, %p216
      %p218 = scmp.ne.s32.totalorder %s207, %s208
      %p219 = scmp.eq.s32.totalorder %s26, 0
      %p220 = por %p218, %p219
      %p221 = scmp.ne.s32.totalorder %s207, %s208
      %p222 = scmp.eq.s32.totalorder %s27, 1
      %p223 = por %p221, %p222
      %p225 = scmp.ne.s32.totalorder %s208, %s224
      %p226 = scmp.eq.s32.totalorder %s27, 0
      %p227 = por %p225, %p226
      %p228 = scmp.le.s32.totalorder 1, %s21
      %p229 = scmp.lt.s32.totalorder %s21, 3
      %p230 = pnand %p228, %p229
      %p231 = pneg %p230
      // Predicated region
      $region9: #{tpu_custom_call.1} parent=5 // pred_check
        _
      $region10: #{tpu_custom_call.1} parent=5 // pred_check_branch
        %233 = sbr.rel (%p230) target = $region12
      $region11: #{tpu_custom_call.1} parent=5 // pred_region
        %s234 = ssub.s32 %s21, 1
        // Predicated region
        $region13: #{tpu_custom_call.1} parent=11 // pred_check
          %p235 = pneg %p68
        $region14: #{tpu_custom_call.1} parent=11 // pred_check_branch
          %237 = sbr.rel (%p235) target = $region16
        $region15: #{tpu_custom_call.1} parent=11 // pred_region
          %s239 = ssub.s32 128, 128
          %240 = vsyncadd [#allocation6], %s239
          %s242 = sshll.u32 [#allocation5], 4
          %s243 = int_to_ptr.vmem [resolvable:$true] %s242
          %245 = dma.hbm_to_vmem [thread:$0]  %s1, 128, %s243, [#allocation6]
        $region16: #{tpu_custom_call.1} parent=11 // pred_fallthru
          _
        // Predicated region
        $region17: #{tpu_custom_call.1} parent=11 // pred_check
          %p246 = pneg %p89
        $region18: #{tpu_custom_call.1} parent=11 // pred_check_branch
          %248 = sbr.rel (%p246) target = $region20
        $region19: #{tpu_custom_call.1} parent=11 // pred_region
          _
        $region20: #{tpu_custom_call.1} parent=11 // pred_fallthru
          _
        // Predicated region
        $region21: #{tpu_custom_call.1} parent=11 // pred_check
          %p249 = pneg %p110
        $region22: #{tpu_custom_call.1} parent=11 // pred_check_branch
          %251 = sbr.rel (%p249) target = $region24
        $region23: #{tpu_custom_call.1} parent=11 // pred_region
          _
        $region24: #{tpu_custom_call.1} parent=11 // pred_fallthru
          _
        // Predicated region
        $region25: #{tpu_custom_call.1} parent=11 // pred_check
          %p252 = pneg %p131
        $region26: #{tpu_custom_call.1} parent=11 // pred_check_branch
          %254 = sbr.rel (%p252) target = $region28
        $region27: #{tpu_custom_call.1} parent=11 // pred_region
          _
        $region28: #{tpu_custom_call.1} parent=11 // pred_fallthru
          _
        // Predicated region
        $region29: #{tpu_custom_call.1} parent=11 // pred_check
          %p255 = pneg %p152
        $region30: #{tpu_custom_call.1} parent=11 // pred_check_branch
          %257 = sbr.rel (%p255) target = $region32
        $region31: #{tpu_custom_call.1} parent=11 // pred_region
          _
        $region32: #{tpu_custom_call.1} parent=11 // pred_fallthru
          _
        // Predicated region
        $region33: #{tpu_custom_call.1} parent=11 // pred_check
          %p258 = pneg %p173
        $region34: #{tpu_custom_call.1} parent=11 // pred_check_branch
          %260 = sbr.rel (%p258) target = $region36
        $region35: #{tpu_custom_call.1} parent=11 // pred_region
          _
        $region36: #{tpu_custom_call.1} parent=11 // pred_fallthru
          _
        // Predicated region
        $region37: #{tpu_custom_call.1} parent=11 // pred_check
          %p261 = pneg %p194
        $region38: #{tpu_custom_call.1} parent=11 // pred_check_branch
          %263 = sbr.rel (%p261) target = $region40
        $region39: #{tpu_custom_call.1} parent=11 // pred_region
          _
        $region40: #{tpu_custom_call.1} parent=11 // pred_fallthru
          _
      $region12: #{tpu_custom_call.1} parent=5 // pred_fallthru
        _
      %p264 = scmp.lt.s32.totalorder %s21, 2
      // Predicated region
      $region41: #{tpu_custom_call.1} parent=5 // pred_check
        %p265 = pneg %p264
      $region42: #{tpu_custom_call.1} parent=5 // pred_check_branch
        %267 = sbr.rel (%p265) target = $region44
      $region43: #{tpu_custom_call.1} parent=5 // pred_region
        // Predicated region
        $region45: #{tpu_custom_call.1} parent=43 // pred_check
          %p268 = pneg %p41
        $region46: #{tpu_custom_call.1} parent=43 // pred_check_branch
          %270 = sbr.rel (%p268) target = $region48
        $region47: #{tpu_custom_call.1} parent=43 // pred_region
          %s271 = sand.u32 %s31, 1
          %s272 = scalar_lea.sflag [#allocation3], %s271
          %s273 = sand.u32 %s31, 1
          %s274 = smul.addr %s273, 8
          %s275 = scalar_lea.vmem [#allocation2], %s274
          %s277 = ssub.s32 128, 128
          %278 = vsyncadd %s272, %s277
          %s279 = smul.addr %s21, 128
          %s280 = scalar_lea.hbm %s0, %s279
          %s282 = sshll.u32 %s275, 4
          %s283 = int_to_ptr.vmem [resolvable:$true] %s282
          %285 = dma.hbm_to_vmem [thread:$0]  %s280, 128, %s283, %s272
        $region48: #{tpu_custom_call.1} parent=43 // pred_fallthru
          _
      $region44: #{tpu_custom_call.1} parent=5 // pred_fallthru
        _
      %p286 = scmp.le.s32.totalorder 1, %s21
      %p287 = scmp.lt.s32.totalorder %s21, 3
      %p288 = pnand %p286, %p287
      %p289 = pneg %p288
      // Predicated region
      $region49: #{tpu_custom_call.1} parent=5 // pred_check
        _
      $region50: #{tpu_custom_call.1} parent=5 // pred_check_branch
        %291 = sbr.rel (%p288) target = $region52
      $region51: #{tpu_custom_call.1} parent=5 // pred_region
        %s292 = ssub.s32 %s21, 1
        %s293 = sand.u32 %s34, 1
        %s294 = scalar_lea.sflag [#allocation3], %s293
        %s295 = sand.u32 %s34, 1
        %s296 = smul.addr %s295, 8
        %s297 = scalar_lea.vmem [#allocation2], %s296
        // Predicated region
        $region53: #{tpu_custom_call.1} parent=51 // pred_check
          %p298 = pneg %p47
        $region54: #{tpu_custom_call.1} parent=51 // pred_check_branch
          %300 = sbr.rel (%p298) target = $region56
        $region55: #{tpu_custom_call.1} parent=51 // pred_region
          %301 = dma.done %s294, 128
        $region56: #{tpu_custom_call.1} parent=51 // pred_fallthru
          _
        // Predicated region
        $region57: #{tpu_custom_call.1} parent=51 // pred_check
          %p302 = pneg %p68
        $region58: #{tpu_custom_call.1} parent=51 // pred_check_branch
          %304 = sbr.rel (%p302) target = $region60
        $region59: #{tpu_custom_call.1} parent=51 // pred_region
          %305 = dma.done [#allocation6], 128
        $region60: #{tpu_custom_call.1} parent=51 // pred_fallthru
          _
        %s306 = sand.u32 %s34, 1
        %s307 = scalar_lea.sflag [#allocation3], %s306
        %s308 = sand.u32 %s34, 1
        %s309 = smul.addr %s308, 8
        %s310 = scalar_lea.vmem [#allocation2], %s309
        %p311 = pneg %p47
        %p312 = pneg %p44
        %p313 = pneg %p68
        %p314 = pneg %p65
        %p315 = pneg %p89
        %p316 = pneg %p86
        %p317 = pneg %p110
        %p318 = pneg %p107
        %p319 = pneg %p131
        %p320 = pneg %p128
        %p321 = pneg %p152
        %p322 = pneg %p149
        %p323 = pneg %p173
        %p324 = pneg %p170
        %p325 = pneg %p194
        %p326 = pneg %p191
        %p327 = pneg %p220
        %p328 = pneg %p217
        %s329 = sand.u32 %s207, 1
        %s330 = scalar_lea.sflag [#allocation4], %s329
        %s331 = sand.u32 %s207, 1
        %s332 = smul.addr %s331, 8
        %s333 = scalar_lea.vmem [#allocation7], %s332
        %v334 = vld [vmem:[%s297] sm:$0xff]
        %v335 = vld [vmem:[#allocation5] sm:$0xff]
        %vm336 = vcmask 261120
        %v337 = vsel %vm336, %v334, 0.0
        %338 = vadd.xlane.f32.xlu0 %v337
        %v339 = vpop.xlane.xlu0 %338
        %v340 = vrcp.pop 32.0
        %v341 = vmul.f32 %v339, %v340
        %v342 = vsub.f32 %v334, %v341
        %v343 = vmul.f32 %v342, %v342
        %v344 = vsel %vm336, %v343, 0.0
        %345 = vadd.xlane.f32.xlu0 %v344
        %v346 = vpop.xlane.xlu0 %345
        %v347 = vmul.f32 %v346, %v340
        %v348 = vadd.f32 %v347, 1e-05
        %v349 = vrsqrt.pop %v348
        %v350 = vmul.f32 %v342, %v349
        %v351 = vlaneseq
        %v352 = vshrl.u32 %v351, 7
        %v353 = vsub.s32 0, %v352
        %v354 = vrot.slane %v335, %v353
        %v355 = vmul.f32 %v350, %v354
        %v356 = vlaneseq
        %v357 = vshrl.u32 %v356, 7
        %v358 = vsub.s32 1, %v357
        %v359 = vrot.slane %v335, %v358
        %v360 = vadd.f32 %v355, %v359
        %v361 = vld [vmem:[%s2] sm:$0xff]
        %v362 = vld [vmem:[%s2 + $0x8] sm:$0xff]
        %v363 = vld [vmem:[%s2 + $0x10] sm:$0xff]
        %v364 = vld [vmem:[%s2 + $0x18] sm:$0xff]
        %v365 = vld [vmem:[%s3] sm:$0x1]
        %v367 = vlaneseq
        %v368 = vshrl.u32 %v367, 7
        %v369 = vsub.s32 0, %v368
        %v370 = vrot.slane %v365, %v369
        %v373 = vsel %vm336, %v360, 0
        %375 = vmatprep.subr.mxu0 0.0
        %376 = vmatpush1.msra.mxu0 %v361
        %377 = vmatprep.subr.mxu0 0.0
        %378 = vmatpush1.msra.mxu0 %v362
        %379 = vmatprep.subr.mxu0 0.0
        %380 = vmatpush1.msra.mxu0 %v363
        %381 = vmatprep.subr.mxu0 0.0
        %382 = vmatpush1.msra.mxu0 %v364
        %383 = vmatprep.subr.mxu0 0.0
        %384 = vmatpush1.msra.mxu0 0.0
        %385 = vmatprep.subr.mxu0 0.0
        %386 = vmatpush1.msra.mxu0 0.0
        %387 = vmatprep.subr.mxu0 0.0
        %388 = vmatpush1.msra.mxu0 0.0
        %389 = vmatprep.subr.mxu0 0.0
        %390 = vmatpush1.msra.mxu0 0.0
        %391 = vmatprep.subr.mxu0 0.0
        %392 = vmatpush1.msra.mxu0 0.0
        %393 = vmatprep.subr.mxu0 0.0
        %394 = vmatpush1.msra.mxu0 0.0
        %395 = vmatprep.subr.mxu0 0.0
        %396 = vmatpush1.msra.mxu0 0.0
        %397 = vmatprep.subr.mxu0 0.0
        %398 = vmatpush1.msra.mxu0 0.0
        %399 = vmatprep.subr.mxu0 0.0
        %400 = vmatpush1.msra.mxu0 0.0
        %401 = vmatprep.subr.mxu0 0.0
        %402 = vmatpush1.msra.mxu0 0.0
        %403 = vmatprep.subr.mxu0 0.0
        %404 = vmatpush1.msra.mxu0 0.0
        %405 = vmatprep.subr.mxu0 0.0
        %406 = vmatpush1.msra.mxu0 0.0
        %407 = vmatprep.subr.mxu0 0.0
        %408 = vmatpush1.msra.mxu0 0.0
        %409 = vmatprep.subr.mxu0 0.0
        %410 = vmatpush1.msra.mxu0 0.0
        %411 = vmatprep.subr.mxu0 0.0
        %412 = vmatpush1.msra.mxu0 0.0
        %413 = vmatprep.subr.mxu0 0.0
        %414 = vmatpush1.msra.mxu0 0.0
        %415 = vmatprep.subr.mxu0 0.0
        %416 = vmatpush1.msra.mxu0 0.0
        %417 = vmatprep.subr.mxu0 0.0
        %418 = vmatpush1.msra.mxu0 0.0
        %419 = vmatprep.subr.mxu0 0.0
        %420 = vmatpush1.msra.mxu0 0.0
        %421 = vmatprep.subr.mxu0 0.0
        %422 = vmatpush1.msra.mxu0 0.0
        %423 = vmatprep.subr.mxu0 0.0
        %424 = vmatpush1.msra.mxu0 0.0
        %425 = vmatprep.subr.mxu0 0.0
        %426 = vmatpush1.msra.mxu0 0.0
        %427 = vmatprep.subr.mxu0 0.0
        %428 = vmatpush1.msra.mxu0 0.0
        %429 = vmatprep.subr.mxu0 0.0
        %430 = vmatpush1.msra.mxu0 0.0
        %431 = vmatprep.subr.mxu0 0.0
        %432 = vmatpush1.msra.mxu0 0.0
        %433 = vmatprep.subr.mxu0 0.0
        %434 = vmatpush1.msra.mxu0 0.0
        %435 = vmatprep.subr.mxu0 0.0
        %436 = vmatpush1.msra.mxu0 0.0
        %437 = vmatprep.subr.mxu0 0.0
        %438 = vmatpush1.msra.mxu0 0.0
        %439 = vmatprep.mubr.f32.mxu0 0.0
        %440 = vmatmul.mubr.f32.gmra.mrb[0].mxu0 %v373
        %v441 = vpop.f32.mrb[0].mxu0
        %v442 = vadd.f32 %v370, %v441
        %v443 = vpop.f32.mrb[0].mxu0
        %444 = vdwg.mxu0
        %446 = vrot.lane.b32.xlu0 %v442, 120
        %v447 = vpop.permute.xlu0 %446
        %448 = vrot.lane.b32.xlu0 %v442, 112
        %v449 = vpop.permute.xlu0 %448
        %450 = vrot.lane.b32.xlu0 %v442, 104
        %v451 = vpop.permute.xlu0 %450
        %452 = vrot.lane.b32.xlu0 %v442, 96
        %v453 = vpop.permute.xlu0 %452
        %vm454 = vcmask 64512
        %v455 = vsel %vm454, %v442, 0
        %v457 = vsel %vm454, %v453, 0
        %459 = vmatprep.subr.mxu0 0.0
        %460 = vmatpush1.xpose.msra.mxu0 %v457
        %461 = vmatprep.subr.mxu0 0.0
        %462 = vmatpush1.xpose.msra.mxu0 0.0
        %463 = vmatprep.subr.mxu0 0.0
        %464 = vmatpush1.xpose.msra.mxu0 0.0
        %465 = vmatprep.subr.mxu0 0.0
        %466 = vmatpush1.xpose.msra.mxu0 0.0
        %467 = vmatprep.subr.mxu0 0.0
        %468 = vmatpush1.xpose.msra.mxu0 0.0
        %469 = vmatprep.subr.mxu0 0.0
        %470 = vmatpush1.xpose.msra.mxu0 0.0
        %471 = vmatprep.subr.mxu0 0.0
        %472 = vmatpush1.xpose.msra.mxu0 0.0
        %473 = vmatprep.subr.mxu0 0.0
        %474 = vmatpush1.xpose.msra.mxu0 0.0
        %475 = vmatprep.subr.mxu0 0.0
        %476 = vmatpush1.xpose.msra.mxu0 0.0
        %477 = vmatprep.subr.mxu0 0.0
        %478 = vmatpush1.xpose.msra.mxu0 0.0
        %479 = vmatprep.subr.mxu0 0.0
        %480 = vmatpush1.xpose.msra.mxu0 0.0
        %481 = vmatprep.subr.mxu0 0.0
        %482 = vmatpush1.xpose.msra.mxu0 0.0
        %483 = vmatprep.subr.mxu0 0.0
        %484 = vmatpush1.xpose.msra.mxu0 0.0
        %485 = vmatprep.subr.mxu0 0.0
        %486 = vmatpush1.xpose.msra.mxu0 0.0
        %487 = vmatprep.subr.mxu0 0.0
        %488 = vmatpush1.xpose.msra.mxu0 0.0
        %489 = vmatprep.subr.mxu0 0.0
        %490 = vmatpush1.xpose.msra.mxu0 0.0
        %491 = vmatprep.subr.mxu0 0.0
        %492 = vmatpush1.xpose.msra.mxu0 0.0
        %493 = vmatprep.subr.mxu0 0.0
        %494 = vmatpush1.xpose.msra.mxu0 0.0
        %495 = vmatprep.subr.mxu0 0.0
        %496 = vmatpush1.xpose.msra.mxu0 0.0
        %497 = vmatprep.subr.mxu0 0.0
        %498 = vmatpush1.xpose.msra.mxu0 0.0
        %499 = vmatprep.subr.mxu0 0.0
        %500 = vmatpush1.xpose.msra.mxu0 0.0
        %501 = vmatprep.subr.mxu0 0.0
        %502 = vmatpush1.xpose.msra.mxu0 0.0
        %503 = vmatprep.subr.mxu0 0.0
        %504 = vmatpush1.xpose.msra.mxu0 0.0
        %505 = vmatprep.subr.mxu0 0.0
        %506 = vmatpush1.xpose.msra.mxu0 0.0
        %507 = vmatprep.subr.mxu0 0.0
        %508 = vmatpush1.xpose.msra.mxu0 0.0
        %509 = vmatprep.subr.mxu0 0.0
        %510 = vmatpush1.xpose.msra.mxu0 0.0
        %511 = vmatprep.subr.mxu0 0.0
        %512 = vmatpush1.xpose.msra.mxu0 0.0
        %513 = vmatprep.subr.mxu0 0.0
        %514 = vmatpush1.xpose.msra.mxu0 0.0
        %515 = vmatprep.subr.mxu0 0.0
        %516 = vmatpush1.xpose.msra.mxu0 0.0
        %517 = vmatprep.subr.mxu0 0.0
        %518 = vmatpush1.xpose.msra.mxu0 0.0
        %519 = vmatprep.subr.mxu0 0.0
        %520 = vmatpush1.xpose.msra.mxu0 0.0
        %521 = vmatprep.subr.mxu0 0.0
        %522 = vmatpush1.xpose.msra.mxu0 0.0
        %523 = vmatprep.mubr.f32.mxu0 0.0
        %524 = vmatmul.mubr.f32.gmra.mrb[0].mxu0 %v455
        %v525 = vpop.f32.mrb[0].mxu0
        %v526 = vadd.f32 0.0, %v525
        %v527 = vpop.f32.mrb[0].mxu0
        %528 = vdwg.mxu0
        %529 = vrot.lane.b32.xlu0 %v447, 96
        %v530 = vpop.permute.xlu0 %529
        %v531 = vsel %vm454, %v447, 0
        %v533 = vsel %vm454, %v530, 0
        %535 = vmatprep.subr.mxu0 0.0
        %536 = vmatpush1.xpose.msra.mxu0 %v533
        %537 = vmatprep.subr.mxu0 0.0
        %538 = vmatpush1.xpose.msra.mxu0 0.0
        %539 = vmatprep.subr.mxu0 0.0
        %540 = vmatpush1.xpose.msra.mxu0 0.0
        %541 = vmatprep.subr.mxu0 0.0
        %542 = vmatpush1.xpose.msra.mxu0 0.0
        %543 = vmatprep.subr.mxu0 0.0
        %544 = vmatpush1.xpose.msra.mxu0 0.0
        %545 = vmatprep.subr.mxu0 0.0
        %546 = vmatpush1.xpose.msra.mxu0 0.0
        %547 = vmatprep.subr.mxu0 0.0
        %548 = vmatpush1.xpose.msra.mxu0 0.0
        %549 = vmatprep.subr.mxu0 0.0
        %550 = vmatpush1.xpose.msra.mxu0 0.0
        %551 = vmatprep.subr.mxu0 0.0
        %552 = vmatpush1.xpose.msra.mxu0 0.0
        %553 = vmatprep.subr.mxu0 0.0
        %554 = vmatpush1.xpose.msra.mxu0 0.0
        %555 = vmatprep.subr.mxu0 0.0
        %556 = vmatpush1.xpose.msra.mxu0 0.0
        %557 = vmatprep.subr.mxu0 0.0
        %558 = vmatpush1.xpose.msra.mxu0 0.0
        %559 = vmatprep.subr.mxu0 0.0
        %560 = vmatpush1.xpose.msra.mxu0 0.0
        %561 = vmatprep.subr.mxu0 0.0
        %562 = vmatpush1.xpose.msra.mxu0 0.0
        %563 = vmatprep.subr.mxu0 0.0
        %564 = vmatpush1.xpose.msra.mxu0 0.0
        %565 = vmatprep.subr.mxu0 0.0
        %566 = vmatpush1.xpose.msra.mxu0 0.0
        %567 = vmatprep.subr.mxu0 0.0
        %568 = vmatpush1.xpose.msra.mxu0 0.0
        %569 = vmatprep.subr.mxu0 0.0
        %570 = vmatpush1.xpose.msra.mxu0 0.0
        %571 = vmatprep.subr.mxu0 0.0
        %572 = vmatpush1.xpose.msra.mxu0 0.0
        %573 = vmatprep.subr.mxu0 0.0
        %574 = vmatpush1.xpose.msra.mxu0 0.0
        %575 = vmatprep.subr.mxu0 0.0
        %576 = vmatpush1.xpose.msra.mxu0 0.0
        %577 = vmatprep.subr.mxu0 0.0
        %578 = vmatpush1.xpose.msra.mxu0 0.0
        %579 = vmatprep.subr.mxu0 0.0
        %580 = vmatpush1.xpose.msra.mxu0 0.0
        %581 = vmatprep.subr.mxu0 0.0
        %582 = vmatpush1.xpose.msra.mxu0 0.0
        %583 = vmatprep.subr.mxu0 0.0
        %584 = vmatpush1.xpose.msra.mxu0 0.0
        %585 = vmatprep.subr.mxu0 0.0
        %586 = vmatpush1.xpose.msra.mxu0 0.0
        %587 = vmatprep.subr.mxu0 0.0
        %588 = vmatpush1.xpose.msra.mxu0 0.0
        %589 = vmatprep.subr.mxu0 0.0
        %590 = vmatpush1.xpose.msra.mxu0 0.0
        %591 = vmatprep.subr.mxu0 0.0
        %592 = vmatpush1.xpose.msra.mxu0 0.0
        %593 = vmatprep.subr.mxu0 0.0
        %594 = vmatpush1.xpose.msra.mxu0 0.0
        %595 = vmatprep.subr.mxu0 0.0
        %596 = vmatpush1.xpose.msra.mxu0 0.0
        %597 = vmatprep.subr.mxu0 0.0
        %598 = vmatpush1.xpose.msra.mxu0 0.0
        %599 = vmatprep.mubr.f32.mxu0 0.0
        %600 = vmatmul.mubr.f32.gmra.mrb[0].mxu0 %v531
        %v601 = vpop.f32.mrb[0].mxu0
        %v602 = vadd.f32 0.0, %v601
        %v603 = vpop.f32.mrb[0].mxu0
        %604 = vdwg.mxu0
        %605 = vrot.lane.b32.xlu0 %v449, 96
        %v606 = vpop.permute.xlu0 %605
        %v607 = vsel %vm454, %v449, 0
        %v609 = vsel %vm454, %v606, 0
        %611 = vmatprep.subr.mxu0 0.0
        %612 = vmatpush1.xpose.msra.mxu0 %v609
        %613 = vmatprep.subr.mxu0 0.0
        %614 = vmatpush1.xpose.msra.mxu0 0.0
        %615 = vmatprep.subr.mxu0 0.0
        %616 = vmatpush1.xpose.msra.mxu0 0.0
        %617 = vmatprep.subr.mxu0 0.0
        %618 = vmatpush1.xpose.msra.mxu0 0.0
        %619 = vmatprep.subr.mxu0 0.0
        %620 = vmatpush1.xpose.msra.mxu0 0.0
        %621 = vmatprep.subr.mxu0 0.0
        %622 = vmatpush1.xpose.msra.mxu0 0.0
        %623 = vmatprep.subr.mxu0 0.0
        %624 = vmatpush1.xpose.msra.mxu0 0.0
        %625 = vmatprep.subr.mxu0 0.0
        %626 = vmatpush1.xpose.msra.mxu0 0.0
        %627 = vmatprep.subr.mxu0 0.0
        %628 = vmatpush1.xpose.msra.mxu0 0.0
        %629 = vmatprep.subr.mxu0 0.0
        %630 = vmatpush1.xpose.msra.mxu0 0.0
        %631 = vmatprep.subr.mxu0 0.0
        %632 = vmatpush1.xpose.msra.mxu0 0.0
        %633 = vmatprep.subr.mxu0 0.0
        %634 = vmatpush1.xpose.msra.mxu0 0.0
        %635 = vmatprep.subr.mxu0 0.0
        %636 = vmatpush1.xpose.msra.mxu0 0.0
        %637 = vmatprep.subr.mxu0 0.0
        %638 = vmatpush1.xpose.msra.mxu0 0.0
        %639 = vmatprep.subr.mxu0 0.0
        %640 = vmatpush1.xpose.msra.mxu0 0.0
        %641 = vmatprep.subr.mxu0 0.0
        %642 = vmatpush1.xpose.msra.mxu0 0.0
        %643 = vmatprep.subr.mxu0 0.0
        %644 = vmatpush1.xpose.msra.mxu0 0.0
        %645 = vmatprep.subr.mxu0 0.0
        %646 = vmatpush1.xpose.msra.mxu0 0.0
        %647 = vmatprep.subr.mxu0 0.0
        %648 = vmatpush1.xpose.msra.mxu0 0.0
        %649 = vmatprep.subr.mxu0 0.0
        %650 = vmatpush1.xpose.msra.mxu0 0.0
        %651 = vmatprep.subr.mxu0 0.0
        %652 = vmatpush1.xpose.msra.mxu0 0.0
        %653 = vmatprep.subr.mxu0 0.0
        %654 = vmatpush1.xpose.msra.mxu0 0.0
        %655 = vmatprep.subr.mxu0 0.0
        %656 = vmatpush1.xpose.msra.mxu0 0.0
        %657 = vmatprep.subr.mxu0 0.0
        %658 = vmatpush1.xpose.msra.mxu0 0.0
        %659 = vmatprep.subr.mxu0 0.0
        %660 = vmatpush1.xpose.msra.mxu0 0.0
        %661 = vmatprep.subr.mxu0 0.0
        %662 = vmatpush1.xpose.msra.mxu0 0.0
        %663 = vmatprep.subr.mxu0 0.0
        %664 = vmatpush1.xpose.msra.mxu0 0.0
        %665 = vmatprep.subr.mxu0 0.0
        %666 = vmatpush1.xpose.msra.mxu0 0.0
        %667 = vmatprep.subr.mxu0 0.0
        %668 = vmatpush1.xpose.msra.mxu0 0.0
        %669 = vmatprep.subr.mxu0 0.0
        %670 = vmatpush1.xpose.msra.mxu0 0.0
        %671 = vmatprep.subr.mxu0 0.0
        %672 = vmatpush1.xpose.msra.mxu0 0.0
        %673 = vmatprep.subr.mxu0 0.0
        %674 = vmatpush1.xpose.msra.mxu0 0.0
        %675 = vmatprep.mubr.f32.mxu0 0.0
        %676 = vmatmul.mubr.f32.gmra.mrb[0].mxu0 %v607
        %v677 = vpop.f32.mrb[0].mxu0
        %v678 = vadd.f32 0.0, %v677
        %v679 = vpop.f32.mrb[0].mxu0
        %680 = vdwg.mxu0
        %681 = vrot.lane.b32.xlu0 %v451, 96
        %v682 = vpop.permute.xlu0 %681
        %v683 = vsel %vm454, %v451, 0
        %v685 = vsel %vm454, %v682, 0
        %687 = vmatprep.subr.mxu0 0.0
        %688 = vmatpush1.xpose.msra.mxu0 %v685
        %689 = vmatprep.subr.mxu0 0.0
        %690 = vmatpush1.xpose.msra.mxu0 0.0
        %691 = vmatprep.subr.mxu0 0.0
        %692 = vmatpush1.xpose.msra.mxu0 0.0
        %693 = vmatprep.subr.mxu0 0.0
        %694 = vmatpush1.xpose.msra.mxu0 0.0
        %695 = vmatprep.subr.mxu0 0.0
        %696 = vmatpush1.xpose.msra.mxu0 0.0
        %697 = vmatprep.subr.mxu0 0.0
        %698 = vmatpush1.xpose.msra.mxu0 0.0
        %699 = vmatprep.subr.mxu0 0.0
        %700 = vmatpush1.xpose.msra.mxu0 0.0
        %701 = vmatprep.subr.mxu0 0.0
        %702 = vmatpush1.xpose.msra.mxu0 0.0
        %703 = vmatprep.subr.mxu0 0.0
        %704 = vmatpush1.xpose.msra.mxu0 0.0
        %705 = vmatprep.subr.mxu0 0.0
        %706 = vmatpush1.xpose.msra.mxu0 0.0
        %707 = vmatprep.subr.mxu0 0.0
        %708 = vmatpush1.xpose.msra.mxu0 0.0
        %709 = vmatprep.subr.mxu0 0.0
        %710 = vmatpush1.xpose.msra.mxu0 0.0
        %711 = vmatprep.subr.mxu0 0.0
        %712 = vmatpush1.xpose.msra.mxu0 0.0
        %713 = vmatprep.subr.mxu0 0.0
        %714 = vmatpush1.xpose.msra.mxu0 0.0
        %715 = vmatprep.subr.mxu0 0.0
        %716 = vmatpush1.xpose.msra.mxu0 0.0
        %717 = vmatprep.subr.mxu0 0.0
        %718 = vmatpush1.xpose.msra.mxu0 0.0
        %719 = vmatprep.subr.mxu0 0.0
        %720 = vmatpush1.xpose.msra.mxu0 0.0
        %721 = vmatprep.subr.mxu0 0.0
        %722 = vmatpush1.xpose.msra.mxu0 0.0
        %723 = vmatprep.subr.mxu0 0.0
        %724 = vmatpush1.xpose.msra.mxu0 0.0
        %725 = vmatprep.subr.mxu0 0.0
        %726 = vmatpush1.xpose.msra.mxu0 0.0
        %727 = vmatprep.subr.mxu0 0.0
        %728 = vmatpush1.xpose.msra.mxu0 0.0
        %729 = vmatprep.subr.mxu0 0.0
        %730 = vmatpush1.xpose.msra.mxu0 0.0
        %731 = vmatprep.subr.mxu0 0.0
        %732 = vmatpush1.xpose.msra.mxu0 0.0
        %733 = vmatprep.subr.mxu0 0.0
        %734 = vmatpush1.xpose.msra.mxu0 0.0
        %735 = vmatprep.subr.mxu0 0.0
        %736 = vmatpush1.xpose.msra.mxu0 0.0
        %737 = vmatprep.subr.mxu0 0.0
        %738 = vmatpush1.xpose.msra.mxu0 0.0
        %739 = vmatprep.subr.mxu0 0.0
        %740 = vmatpush1.xpose.msra.mxu0 0.0
        %741 = vmatprep.subr.mxu0 0.0
        %742 = vmatpush1.xpose.msra.mxu0 0.0
        %743 = vmatprep.subr.mxu0 0.0
        %744 = vmatpush1.xpose.msra.mxu0 0.0
        %745 = vmatprep.subr.mxu0 0.0
        %746 = vmatpush1.xpose.msra.mxu0 0.0
        %747 = vmatprep.subr.mxu0 0.0
        %748 = vmatpush1.xpose.msra.mxu0 0.0
        %749 = vmatprep.subr.mxu0 0.0
        %750 = vmatpush1.xpose.msra.mxu0 0.0
        %751 = vmatprep.mubr.f32.mxu0 0.0
        %752 = vmatmul.mubr.f32.gmra.mrb[0].mxu0 %v683
        %v753 = vpop.f32.mrb[0].mxu0
        %v754 = vadd.f32 0.0, %v753
        %v755 = vpop.f32.mrb[0].mxu0
        %756 = vdwg.mxu0
        %v757 = vsel %vm454, %v526, -inf
        %758 = vmax.xlane.f32.xlu0 %v757
        %v759 = vpop.xlane.xlu0 %758
        %v760 = vsel %vm454, %v602, -inf
        %761 = vmax.xlane.f32.xlu0 %v760
        %v762 = vpop.xlane.xlu0 %761
        %v763 = vsel %vm454, %v678, -inf
        %764 = vmax.xlane.f32.xlu0 %v763
        %v765 = vpop.xlane.xlu0 %764
        %v766 = vsel %vm454, %v754, -inf
        %767 = vmax.xlane.f32.xlu0 %v766
        %v768 = vpop.xlane.xlu0 %767
        %v769 = vsub.f32 %v526, %v759
        %v770 = vsub.f32 %v602, %v762
        %v771 = vsub.f32 %v678, %v765
        %v772 = vsub.f32 %v754, %v768
        %v773 = vmul.f32 %v769, 1.442695
        %v774 = vpow.pop %v773
        %v775 = vmul.f32 %v770, 1.442695
        %v776 = vpow.pop %v775
        %v777 = vmul.f32 %v771, 1.442695
        %v778 = vpow.pop %v777
        %v779 = vmul.f32 %v772, 1.442695
        %v780 = vpow.pop %v779
        %v781 = vsel %vm454, %v774, 0.0
        %782 = vadd.xlane.f32.xlu0 %v781
        %v783 = vpop.xlane.xlu0 %782
        %v784 = vsel %vm454, %v776, 0.0
        %785 = vadd.xlane.f32.xlu0 %v784
        %v786 = vpop.xlane.xlu0 %785
        %v787 = vsel %vm454, %v778, 0.0
        %788 = vadd.xlane.f32.xlu0 %v787
        %v789 = vpop.xlane.xlu0 %788
        %v790 = vsel %vm454, %v780, 0.0
        %791 = vadd.xlane.f32.xlu0 %v790
        %v792 = vpop.xlane.xlu0 %791
        %v793 = vrcp.pop %v783
        %v794 = vrcp.pop %v786
        %v795 = vrcp.pop %v789
        %v796 = vrcp.pop %v792
        %v797 = vmul.f32 %v774, %v793
        %v798 = vmul.f32 %v776, %v794
        %v799 = vmul.f32 %v778, %v795
        %v800 = vmul.f32 %v780, %v796
        %801 = vrot.lane.b32.xlu0 %v442, 64
        %v802 = vpop.permute.xlu0 %801
        %v805 = vsel %vm454, %v797, 0
        %807 = vmatprep.subr.mxu0 0.0
        %808 = vmatpush1.msra.mxu0 %v802
        %809 = vmatprep.subr.mxu0 0.0
        %810 = vmatpush1.msra.mxu0 0.0
        %811 = vmatprep.subr.mxu0 0.0
        %812 = vmatpush1.msra.mxu0 0.0
        %813 = vmatprep.subr.mxu0 0.0
        %814 = vmatpush1.msra.mxu0 0.0
        %815 = vmatprep.subr.mxu0 0.0
        %816 = vmatpush1.msra.mxu0 0.0
        %817 = vmatprep.subr.mxu0 0.0
        %818 = vmatpush1.msra.mxu0 0.0
        %819 = vmatprep.subr.mxu0 0.0
        %820 = vmatpush1.msra.mxu0 0.0
        %821 = vmatprep.subr.mxu0 0.0
        %822 = vmatpush1.msra.mxu0 0.0
        %823 = vmatprep.subr.mxu0 0.0
        %824 = vmatpush1.msra.mxu0 0.0
        %825 = vmatprep.subr.mxu0 0.0
        %826 = vmatpush1.msra.mxu0 0.0
        %827 = vmatprep.subr.mxu0 0.0
        %828 = vmatpush1.msra.mxu0 0.0
        %829 = vmatprep.subr.mxu0 0.0
        %830 = vmatpush1.msra.mxu0 0.0
        %831 = vmatprep.subr.mxu0 0.0
        %832 = vmatpush1.msra.mxu0 0.0
        %833 = vmatprep.subr.mxu0 0.0
        %834 = vmatpush1.msra.mxu0 0.0
        %835 = vmatprep.subr.mxu0 0.0
        %836 = vmatpush1.msra.mxu0 0.0
        %837 = vmatprep.subr.mxu0 0.0
        %838 = vmatpush1.msra.mxu0 0.0
        %839 = vmatprep.subr.mxu0 0.0
        %840 = vmatpush1.msra.mxu0 0.0
        %841 = vmatprep.subr.mxu0 0.0
        %842 = vmatpush1.msra.mxu0 0.0
        %843 = vmatprep.subr.mxu0 0.0
        %844 = vmatpush1.msra.mxu0 0.0
        %845 = vmatprep.subr.mxu0 0.0
        %846 = vmatpush1.msra.mxu0 0.0
        %847 = vmatprep.subr.mxu0 0.0
        %848 = vmatpush1.msra.mxu0 0.0
        %849 = vmatprep.subr.mxu0 0.0
        %850 = vmatpush1.msra.mxu0 0.0
        %851 = vmatprep.subr.mxu0 0.0
        %852 = vmatpush1.msra.mxu0 0.0
        %853 = vmatprep.subr.mxu0 0.0
        %854 = vmatpush1.msra.mxu0 0.0
        %855 = vmatprep.subr.mxu0 0.0
        %856 = vmatpush1.msra.mxu0 0.0
        %857 = vmatprep.subr.mxu0 0.0
        %858 = vmatpush1.msra.mxu0 0.0
        %859 = vmatprep.subr.mxu0 0.0
        %860 = vmatpush1.msra.mxu0 0.0
        %861 = vmatprep.subr.mxu0 0.0
        %862 = vmatpush1.msra.mxu0 0.0
        %863 = vmatprep.subr.mxu0 0.0
        %864 = vmatpush1.msra.mxu0 0.0
        %865 = vmatprep.subr.mxu0 0.0
        %866 = vmatpush1.msra.mxu0 0.0
        %867 = vmatprep.subr.mxu0 0.0
        %868 = vmatpush1.msra.mxu0 0.0
        %869 = vmatprep.subr.mxu0 0.0
        %870 = vmatpush1.msra.mxu0 0.0
        %871 = vmatprep.mubr.f32.mxu0 0.0
        %872 = vmatmul.mubr.f32.gmra.mrb[0].mxu0 %v805
        %v873 = vpop.f32.mrb[0].mxu0
        %v874 = vadd.f32 0.0, %v873
        %v875 = vpop.f32.mrb[0].mxu0
        %876 = vdwg.mxu0
        %877 = vrot.lane.b32.xlu0 %v447, 64
        %v878 = vpop.permute.xlu0 %877
        %v881 = vsel %vm454, %v798, 0
        %883 = vmatprep.subr.mxu0 0.0
        %884 = vmatpush1.msra.mxu0 %v878
        %885 = vmatprep.subr.mxu0 0.0
        %886 = vmatpush1.msra.mxu0 0.0
        %887 = vmatprep.subr.mxu0 0.0
        %888 = vmatpush1.msra.mxu0 0.0
        %889 = vmatprep.subr.mxu0 0.0
        %890 = vmatpush1.msra.mxu0 0.0
        %891 = vmatprep.subr.mxu0 0.0
        %892 = vmatpush1.msra.mxu0 0.0
        %893 = vmatprep.subr.mxu0 0.0
        %894 = vmatpush1.msra.mxu0 0.0
        %895 = vmatprep.subr.mxu0 0.0
        %896 = vmatpush1.msra.mxu0 0.0
        %897 = vmatprep.subr.mxu0 0.0
        %898 = vmatpush1.msra.mxu0 0.0
        %899 = vmatprep.subr.mxu0 0.0
        %900 = vmatpush1.msra.mxu0 0.0
        %901 = vmatprep.subr.mxu0 0.0
        %902 = vmatpush1.msra.mxu0 0.0
        %903 = vmatprep.subr.mxu0 0.0
        %904 = vmatpush1.msra.mxu0 0.0
        %905 = vmatprep.subr.mxu0 0.0
        %906 = vmatpush1.msra.mxu0 0.0
        %907 = vmatprep.subr.mxu0 0.0
        %908 = vmatpush1.msra.mxu0 0.0
        %909 = vmatprep.subr.mxu0 0.0
        %910 = vmatpush1.msra.mxu0 0.0
        %911 = vmatprep.subr.mxu0 0.0
        %912 = vmatpush1.msra.mxu0 0.0
        %913 = vmatprep.subr.mxu0 0.0
        %914 = vmatpush1.msra.mxu0 0.0
        %915 = vmatprep.subr.mxu0 0.0
        %916 = vmatpush1.msra.mxu0 0.0
        %917 = vmatprep.subr.mxu0 0.0
        %918 = vmatpush1.msra.mxu0 0.0
        %919 = vmatprep.subr.mxu0 0.0
        %920 = vmatpush1.msra.mxu0 0.0
        %921 = vmatprep.subr.mxu0 0.0
        %922 = vmatpush1.msra.mxu0 0.0
        %923 = vmatprep.subr.mxu0 0.0
        %924 = vmatpush1.msra.mxu0 0.0
        %925 = vmatprep.subr.mxu0 0.0
        %926 = vmatpush1.msra.mxu0 0.0
        %927 = vmatprep.subr.mxu0 0.0
        %928 = vmatpush1.msra.mxu0 0.0
        %929 = vmatprep.subr.mxu0 0.0
        %930 = vmatpush1.msra.mxu0 0.0
        %931 = vmatprep.subr.mxu0 0.0
        %932 = vmatpush1.msra.mxu0 0.0
        %933 = vmatprep.subr.mxu0 0.0
        %934 = vmatpush1.msra.mxu0 0.0
        %935 = vmatprep.subr.mxu0 0.0
        %936 = vmatpush1.msra.mxu0 0.0
        %937 = vmatprep.subr.mxu0 0.0
        %938 = vmatpush1.msra.mxu0 0.0
        %939 = vmatprep.subr.mxu0 0.0
        %940 = vmatpush1.msra.mxu0 0.0
        %941 = vmatprep.subr.mxu0 0.0
        %942 = vmatpush1.msra.mxu0 0.0
        %943 = vmatprep.subr.mxu0 0.0
        %944 = vmatpush1.msra.mxu0 0.0
        %945 = vmatprep.subr.mxu0 0.0
        %946 = vmatpush1.msra.mxu0 0.0
        %947 = vmatprep.mubr.f32.mxu0 0.0
        %948 = vmatmul.mubr.f32.gmra.mrb[0].mxu0 %v881
        %v949 = vpop.f32.mrb[0].mxu0
        %v950 = vadd.f32 0.0, %v949
        %v951 = vpop.f32.mrb[0].mxu0
        %952 = vdwg.mxu0
        %953 = vrot.lane.b32.xlu0 %v449, 64
        %v954 = vpop.permute.xlu0 %953
        %v957 = vsel %vm454, %v799, 0
        %959 = vmatprep.subr.mxu0 0.0
        %960 = vmatpush1.msra.mxu0 %v954
        %961 = vmatprep.subr.mxu0 0.0
        %962 = vmatpush1.msra.mxu0 0.0
        %963 = vmatprep.subr.mxu0 0.0
        %964 = vmatpush1.msra.mxu0 0.0
        %965 = vmatprep.subr.mxu0 0.0
        %966 = vmatpush1.msra.mxu0 0.0
        %967 = vmatprep.subr.mxu0 0.0
        %968 = vmatpush1.msra.mxu0 0.0
        %969 = vmatprep.subr.mxu0 0.0
        %970 = vmatpush1.msra.mxu0 0.0
        %971 = vmatprep.subr.mxu0 0.0
        %972 = vmatpush1.msra.mxu0 0.0
        %973 = vmatprep.subr.mxu0 0.0
        %974 = vmatpush1.msra.mxu0 0.0
        %975 = vmatprep.subr.mxu0 0.0
        %976 = vmatpush1.msra.mxu0 0.0
        %977 = vmatprep.subr.mxu0 0.0
        %978 = vmatpush1.msra.mxu0 0.0
        %979 = vmatprep.subr.mxu0 0.0
        %980 = vmatpush1.msra.mxu0 0.0
        %981 = vmatprep.subr.mxu0 0.0
        %982 = vmatpush1.msra.mxu0 0.0
        %983 = vmatprep.subr.mxu0 0.0
        %984 = vmatpush1.msra.mxu0 0.0
        %985 = vmatprep.subr.mxu0 0.0
        %986 = vmatpush1.msra.mxu0 0.0
        %987 = vmatprep.subr.mxu0 0.0
        %988 = vmatpush1.msra.mxu0 0.0
        %989 = vmatprep.subr.mxu0 0.0
        %990 = vmatpush1.msra.mxu0 0.0
        %991 = vmatprep.subr.mxu0 0.0
        %992 = vmatpush1.msra.mxu0 0.0
        %993 = vmatprep.subr.mxu0 0.0
        %994 = vmatpush1.msra.mxu0 0.0
        %995 = vmatprep.subr.mxu0 0.0
        %996 = vmatpush1.msra.mxu0 0.0
        %997 = vmatprep.subr.mxu0 0.0
        %998 = vmatpush1.msra.mxu0 0.0
        %999 = vmatprep.subr.mxu0 0.0
        %1000 = vmatpush1.msra.mxu0 0.0
        %1001 = vmatprep.subr.mxu0 0.0
        %1002 = vmatpush1.msra.mxu0 0.0
        %1003 = vmatprep.subr.mxu0 0.0
        %1004 = vmatpush1.msra.mxu0 0.0
        %1005 = vmatprep.subr.mxu0 0.0
        %1006 = vmatpush1.msra.mxu0 0.0
        %1007 = vmatprep.subr.mxu0 0.0
        %1008 = vmatpush1.msra.mxu0 0.0
        %1009 = vmatprep.subr.mxu0 0.0
        %1010 = vmatpush1.msra.mxu0 0.0
        %1011 = vmatprep.subr.mxu0 0.0
        %1012 = vmatpush1.msra.mxu0 0.0
        %1013 = vmatprep.subr.mxu0 0.0
        %1014 = vmatpush1.msra.mxu0 0.0
        %1015 = vmatprep.subr.mxu0 0.0
        %1016 = vmatpush1.msra.mxu0 0.0
        %1017 = vmatprep.subr.mxu0 0.0
        %1018 = vmatpush1.msra.mxu0 0.0
        %1019 = vmatprep.subr.mxu0 0.0
        %1020 = vmatpush1.msra.mxu0 0.0
        %1021 = vmatprep.subr.mxu0 0.0
        %1022 = vmatpush1.msra.mxu0 0.0
        %1023 = vmatprep.mubr.f32.mxu0 0.0
        %1024 = vmatmul.mubr.f32.gmra.mrb[0].mxu0 %v957
        %v1025 = vpop.f32.mrb[0].mxu0
        %v1026 = vadd.f32 0.0, %v1025
        %v1027 = vpop.f32.mrb[0].mxu0
        %1028 = vdwg.mxu0
        %1029 = vrot.lane.b32.xlu0 %v451, 64
        %v1030 = vpop.permute.xlu0 %1029
        %v1033 = vsel %vm454, %v800, 0
        %1035 = vmatprep.subr.mxu0 0.0
        %1036 = vmatpush1.msra.mxu0 %v1030
        %1037 = vmatprep.subr.mxu0 0.0
        %1038 = vmatpush1.msra.mxu0 0.0
        %1039 = vmatprep.subr.mxu0 0.0
        %1040 = vmatpush1.msra.mxu0 0.0
        %1041 = vmatprep.subr.mxu0 0.0
        %1042 = vmatpush1.msra.mxu0 0.0
        %1043 = vmatprep.subr.mxu0 0.0
        %1044 = vmatpush1.msra.mxu0 0.0
        %1045 = vmatprep.subr.mxu0 0.0
        %1046 = vmatpush1.msra.mxu0 0.0
        %1047 = vmatprep.subr.mxu0 0.0
        %1048 = vmatpush1.msra.mxu0 0.0
        %1049 = vmatprep.subr.mxu0 0.0
        %1050 = vmatpush1.msra.mxu0 0.0
        %1051 = vmatprep.subr.mxu0 0.0
        %1052 = vmatpush1.msra.mxu0 0.0
        %1053 = vmatprep.subr.mxu0 0.0
        %1054 = vmatpush1.msra.mxu0 0.0
        %1055 = vmatprep.subr.mxu0 0.0
        %1056 = vmatpush1.msra.mxu0 0.0
        %1057 = vmatprep.subr.mxu0 0.0
        %1058 = vmatpush1.msra.mxu0 0.0
        %1059 = vmatprep.subr.mxu0 0.0
        %1060 = vmatpush1.msra.mxu0 0.0
        %1061 = vmatprep.subr.mxu0 0.0
        %1062 = vmatpush1.msra.mxu0 0.0
        %1063 = vmatprep.subr.mxu0 0.0
        %1064 = vmatpush1.msra.mxu0 0.0
        %1065 = vmatprep.subr.mxu0 0.0
        %1066 = vmatpush1.msra.mxu0 0.0
        %1067 = vmatprep.subr.mxu0 0.0
        %1068 = vmatpush1.msra.mxu0 0.0
        %1069 = vmatprep.subr.mxu0 0.0
        %1070 = vmatpush1.msra.mxu0 0.0
        %1071 = vmatprep.subr.mxu0 0.0
        %1072 = vmatpush1.msra.mxu0 0.0
        %1073 = vmatprep.subr.mxu0 0.0
        %1074 = vmatpush1.msra.mxu0 0.0
        %1075 = vmatprep.subr.mxu0 0.0
        %1076 = vmatpush1.msra.mxu0 0.0
        %1077 = vmatprep.subr.mxu0 0.0
        %1078 = vmatpush1.msra.mxu0 0.0
        %1079 = vmatprep.subr.mxu0 0.0
        %1080 = vmatpush1.msra.mxu0 0.0
        %1081 = vmatprep.subr.mxu0 0.0
        %1082 = vmatpush1.msra.mxu0 0.0
        %1083 = vmatprep.subr.mxu0 0.0
        %1084 = vmatpush1.msra.mxu0 0.0
        %1085 = vmatprep.subr.mxu0 0.0
        %1086 = vmatpush1.msra.mxu0 0.0
        %1087 = vmatprep.subr.mxu0 0.0
        %1088 = vmatpush1.msra.mxu0 0.0
        %1089 = vmatprep.subr.mxu0 0.0
        %1090 = vmatpush1.msra.mxu0 0.0
        %1091 = vmatprep.subr.mxu0 0.0
        %1092 = vmatpush1.msra.mxu0 0.0
        %1093 = vmatprep.subr.mxu0 0.0
        %1094 = vmatpush1.msra.mxu0 0.0
        %1095 = vmatprep.subr.mxu0 0.0
        %1096 = vmatpush1.msra.mxu0 0.0
        %1097 = vmatprep.subr.mxu0 0.0
        %1098 = vmatpush1.msra.mxu0 0.0
        %1099 = vmatprep.mubr.f32.mxu0 0.0
        %1100 = vmatmul.mubr.f32.gmra.mrb[0].mxu0 %v1033
        %v1101 = vpop.f32.mrb[0].mxu0
        %v1102 = vadd.f32 0.0, %v1101
        %v1103 = vpop.f32.mrb[0].mxu0
        %1104 = vdwg.mxu0
        %1106 = vrot.lane.b32.xlu0 %v950, 8
        %v1107 = vpop.permute.xlu0 %1106
        %1110 = vrot.lane.b32.xlu0 %v1026, 16
        %v1111 = vpop.permute.xlu0 %1110
        %1114 = vrot.lane.b32.xlu0 %v1102, 24
        %v1115 = vpop.permute.xlu0 %1114
        %v1117 = vsel %vm454, %v874, %v1107
        %vm1118 = vcmask 130048
        %v1119 = vsel %vm1118, %v1117, %v1111
        %vm1120 = vcmask 195584
        %v1121 = vsel %vm1120, %v1119, %v1115
        %v1122 = vld [vmem:[%s4] sm:$0xff]
        %v1123 = vld [vmem:[%s4 + $0x8] sm:$0xff]
        %v1124 = vld [vmem:[%s4 + $0x10] sm:$0xff]
        %v1125 = vld [vmem:[%s4 + $0x18] sm:$0xff]
        %v1126 = vlaneseq
        %v1127 = vshrl.u32 %v1126, 7
        %v1128 = vsub.s32 2, %v1127
        %v1129 = vrot.slane %v335, %v1128
        %v1131 = vsel %vm336, %v1121, 0
        %1133 = vmatprep.subr.mxu0 0.0
        %1134 = vmatpush1.msra.mxu0 %v1122
        %1135 = vmatprep.subr.mxu0 0.0
        %1136 = vmatpush1.msra.mxu0 %v1123
        %1137 = vmatprep.subr.mxu0 0.0
        %1138 = vmatpush1.msra.mxu0 %v1124
        %1139 = vmatprep.subr.mxu0 0.0
        %1140 = vmatpush1.msra.mxu0 %v1125
        %1141 = vmatprep.subr.mxu0 0.0
        %1142 = vmatpush1.msra.mxu0 0.0
        %1143 = vmatprep.subr.mxu0 0.0
        %1144 = vmatpush1.msra.mxu0 0.0
        %1145 = vmatprep.subr.mxu0 0.0
        %1146 = vmatpush1.msra.mxu0 0.0
        %1147 = vmatprep.subr.mxu0 0.0
        %1148 = vmatpush1.msra.mxu0 0.0
        %1149 = vmatprep.subr.mxu0 0.0
        %1150 = vmatpush1.msra.mxu0 0.0
        %1151 = vmatprep.subr.mxu0 0.0
        %1152 = vmatpush1.msra.mxu0 0.0
        %1153 = vmatprep.subr.mxu0 0.0
        %1154 = vmatpush1.msra.mxu0 0.0
        %1155 = vmatprep.subr.mxu0 0.0
        %1156 = vmatpush1.msra.mxu0 0.0
        %1157 = vmatprep.subr.mxu0 0.0
        %1158 = vmatpush1.msra.mxu0 0.0
        %1159 = vmatprep.subr.mxu0 0.0
        %1160 = vmatpush1.msra.mxu0 0.0
        %1161 = vmatprep.subr.mxu0 0.0
        %1162 = vmatpush1.msra.mxu0 0.0
        %1163 = vmatprep.subr.mxu0 0.0
        %1164 = vmatpush1.msra.mxu0 0.0
        %1165 = vmatprep.subr.mxu0 0.0
        %1166 = vmatpush1.msra.mxu0 0.0
        %1167 = vmatprep.subr.mxu0 0.0
        %1168 = vmatpush1.msra.mxu0 0.0
        %1169 = vmatprep.subr.mxu0 0.0
        %1170 = vmatpush1.msra.mxu0 0.0
        %1171 = vmatprep.subr.mxu0 0.0
        %1172 = vmatpush1.msra.mxu0 0.0
        %1173 = vmatprep.subr.mxu0 0.0
        %1174 = vmatpush1.msra.mxu0 0.0
        %1175 = vmatprep.subr.mxu0 0.0
        %1176 = vmatpush1.msra.mxu0 0.0
        %1177 = vmatprep.subr.mxu0 0.0
        %1178 = vmatpush1.msra.mxu0 0.0
        %1179 = vmatprep.subr.mxu0 0.0
        %1180 = vmatpush1.msra.mxu0 0.0
        %1181 = vmatprep.subr.mxu0 0.0
        %1182 = vmatpush1.msra.mxu0 0.0
        %1183 = vmatprep.subr.mxu0 0.0
        %1184 = vmatpush1.msra.mxu0 0.0
        %1185 = vmatprep.subr.mxu0 0.0
        %1186 = vmatpush1.msra.mxu0 0.0
        %1187 = vmatprep.subr.mxu0 0.0
        %1188 = vmatpush1.msra.mxu0 0.0
        %1189 = vmatprep.subr.mxu0 0.0
        %1190 = vmatpush1.msra.mxu0 0.0
        %1191 = vmatprep.subr.mxu0 0.0
        %1192 = vmatpush1.msra.mxu0 0.0
        %1193 = vmatprep.subr.mxu0 0.0
        %1194 = vmatpush1.msra.mxu0 0.0
        %1195 = vmatprep.subr.mxu0 0.0
        %1196 = vmatpush1.msra.mxu0 0.0
        %1197 = vmatprep.mubr.f32.mxu0 0.0
        %1198 = vmatmul.mubr.f32.gmra.mrb[0].mxu0 %v1131
        %v1199 = vpop.f32.mrb[0].mxu0
        %v1200 = vadd.f32 %v1129, %v1199
        %v1201 = vpop.f32.mrb[0].mxu0
        %1202 = vdwg.mxu0
        %v1203 = vadd.f32 %v334, %v1200
        %v1204 = vsel %vm336, %v1203, 0.0
        %1205 = vadd.xlane.f32.xlu0 %v1204
        %v1206 = vpop.xlane.xlu0 %1205
        %v1207 = vmul.f32 %v1206, %v340
        %v1208 = vsub.f32 %v1203, %v1207
        %v1209 = vmul.f32 %v1208, %v1208
        %v1210 = vsel %vm336, %v1209, 0.0
        %1211 = vadd.xlane.f32.xlu0 %v1210
        %v1212 = vpop.xlane.xlu0 %1211
        %v1213 = vmul.f32 %v1212, %v340
        %v1214 = vadd.f32 %v1213, 1e-05
        %v1215 = vrsqrt.pop %v1214
        %v1216 = vmul.f32 %v1208, %v1215
        %v1217 = vlaneseq
        %v1218 = vshrl.u32 %v1217, 7
        %v1219 = vsub.s32 3, %v1218
        %v1220 = vrot.slane %v335, %v1219
        %v1221 = vmul.f32 %v1216, %v1220
        %v1222 = vlaneseq
        %v1223 = vshrl.u32 %v1222, 7
        %v1224 = vsub.s32 4, %v1223
        %v1225 = vrot.slane %v335, %v1224
        %v1226 = vadd.f32 %v1221, %v1225
        %v1227 = vld [vmem:[%s5] sm:$0xff]
        %v1228 = vld [vmem:[%s5 + $0x8] sm:$0xff]
        %v1229 = vld [vmem:[%s5 + $0x10] sm:$0xff]
        %v1230 = vld [vmem:[%s5 + $0x18] sm:$0xff]
        %v1231 = vld [vmem:[%s6] sm:$0x1]
        %v1233 = vlaneseq
        %v1234 = vshrl.u32 %v1233, 7
        %v1235 = vsub.s32 0, %v1234
        %v1236 = vrot.slane %v1231, %v1235
        %v1239 = vsel %vm336, %v1226, 0
        %1241 = vmatprep.subr.mxu0 0.0
        %1242 = vmatpush1.msra.mxu0 %v1227
        %1243 = vmatprep.subr.mxu0 0.0
        %1244 = vmatpush1.msra.mxu0 %v1228
        %1245 = vmatprep.subr.mxu0 0.0
        %1246 = vmatpush1.msra.mxu0 %v1229
        %1247 = vmatprep.subr.mxu0 0.0
        %1248 = vmatpush1.msra.mxu0 %v1230
        %1249 = vmatprep.subr.mxu0 0.0
        %1250 = vmatpush1.msra.mxu0 0.0
        %1251 = vmatprep.subr.mxu0 0.0
        %1252 = vmatpush1.msra.mxu0 0.0
        %1253 = vmatprep.subr.mxu0 0.0
        %1254 = vmatpush1.msra.mxu0 0.0
        %1255 = vmatprep.subr.mxu0 0.0
        %1256 = vmatpush1.msra.mxu0 0.0
        %1257 = vmatprep.subr.mxu0 0.0
        %1258 = vmatpush1.msra.mxu0 0.0
        %1259 = vmatprep.subr.mxu0 0.0
        %1260 = vmatpush1.msra.mxu0 0.0
        %1261 = vmatprep.subr.mxu0 0.0
        %1262 = vmatpush1.msra.mxu0 0.0
        %1263 = vmatprep.subr.mxu0 0.0
        %1264 = vmatpush1.msra.mxu0 0.0
        %1265 = vmatprep.subr.mxu0 0.0
        %1266 = vmatpush1.msra.mxu0 0.0
        %1267 = vmatprep.subr.mxu0 0.0
        %1268 = vmatpush1.msra.mxu0 0.0
        %1269 = vmatprep.subr.mxu0 0.0
        %1270 = vmatpush1.msra.mxu0 0.0
        %1271 = vmatprep.subr.mxu0 0.0
        %1272 = vmatpush1.msra.mxu0 0.0
        %1273 = vmatprep.subr.mxu0 0.0
        %1274 = vmatpush1.msra.mxu0 0.0
        %1275 = vmatprep.subr.mxu0 0.0
        %1276 = vmatpush1.msra.mxu0 0.0
        %1277 = vmatprep.subr.mxu0 0.0
        %1278 = vmatpush1.msra.mxu0 0.0
        %1279 = vmatprep.subr.mxu0 0.0
        %1280 = vmatpush1.msra.mxu0 0.0
        %1281 = vmatprep.subr.mxu0 0.0
        %1282 = vmatpush1.msra.mxu0 0.0
        %1283 = vmatprep.subr.mxu0 0.0
        %1284 = vmatpush1.msra.mxu0 0.0
        %1285 = vmatprep.subr.mxu0 0.0
        %1286 = vmatpush1.msra.mxu0 0.0
        %1287 = vmatprep.subr.mxu0 0.0
        %1288 = vmatpush1.msra.mxu0 0.0
        %1289 = vmatprep.subr.mxu0 0.0
        %1290 = vmatpush1.msra.mxu0 0.0
        %1291 = vmatprep.subr.mxu0 0.0
        %1292 = vmatpush1.msra.mxu0 0.0
        %1293 = vmatprep.subr.mxu0 0.0
        %1294 = vmatpush1.msra.mxu0 0.0
        %1295 = vmatprep.subr.mxu0 0.0
        %1296 = vmatpush1.msra.mxu0 0.0
        %1297 = vmatprep.subr.mxu0 0.0
        %1298 = vmatpush1.msra.mxu0 0.0
        %1299 = vmatprep.subr.mxu0 0.0
        %1300 = vmatpush1.msra.mxu0 0.0
        %1301 = vmatprep.subr.mxu0 0.0
        %1302 = vmatpush1.msra.mxu0 0.0
        %1303 = vmatprep.subr.mxu0 0.0
        %1304 = vmatpush1.msra.mxu0 0.0
        %1305 = vmatprep.mubr.f32.mxu0 0.0
        %1306 = vmatmul.mubr.f32.gmra.mrb[0].mxu0 %v1239
        %v1307 = vpop.f32.mrb[0].mxu0
        %v1308 = vadd.f32 %v1236, %v1307
        %v1309 = vpop.f32.mrb[0].mxu0
        %1310 = vdwg.mxu0
        %v1311 = vmax.f32 %v1308, 0.0
        %v1312 = vld [vmem:[%s7] sm:$0xff]
        %v1313 = vld [vmem:[%s7 + $0x8] sm:$0xff]
        %v1314 = vld [vmem:[%s7 + $0x10] sm:$0xff]
        %v1315 = vld [vmem:[%s7 + $0x18] sm:$0xff]
        %v1316 = vld [vmem:[%s7 + $0x20] sm:$0xff]
        %v1317 = vld [vmem:[%s7 + $0x28] sm:$0xff]
        %v1318 = vld [vmem:[%s7 + $0x30] sm:$0xff]
        %v1319 = vld [vmem:[%s7 + $0x38] sm:$0xff]
        %v1320 = vlaneseq
        %v1321 = vshrl.u32 %v1320, 7
        %v1322 = vsub.s32 5, %v1321
        %v1323 = vrot.slane %v335, %v1322
        %vm1324 = vcmask 523264
        %v1326 = vsel %vm1324, %v1311, 0
        %1328 = vmatprep.subr.mxu0 0.0
        %1329 = vmatpush1.msra.mxu0 %v1312
        %1330 = vmatprep.subr.mxu0 0.0
        %1331 = vmatpush1.msra.mxu0 %v1313
        %1332 = vmatprep.subr.mxu0 0.0
        %1333 = vmatpush1.msra.mxu0 %v1314
        %1334 = vmatprep.subr.mxu0 0.0
        %1335 = vmatpush1.msra.mxu0 %v1315
        %1336 = vmatprep.subr.mxu0 0.0
        %1337 = vmatpush1.msra.mxu0 %v1316
        %1338 = vmatprep.subr.mxu0 0.0
        %1339 = vmatpush1.msra.mxu0 %v1317
        %1340 = vmatprep.subr.mxu0 0.0
        %1341 = vmatpush1.msra.mxu0 %v1318
        %1342 = vmatprep.subr.mxu0 0.0
        %1343 = vmatpush1.msra.mxu0 %v1319
        %1344 = vmatprep.subr.mxu0 0.0
        %1345 = vmatpush1.msra.mxu0 0.0
        %1346 = vmatprep.subr.mxu0 0.0
        %1347 = vmatpush1.msra.mxu0 0.0
        %1348 = vmatprep.subr.mxu0 0.0
        %1349 = vmatpush1.msra.mxu0 0.0
        %1350 = vmatprep.subr.mxu0 0.0
        %1351 = vmatpush1.msra.mxu0 0.0
        %1352 = vmatprep.subr.mxu0 0.0
        %1353 = vmatpush1.msra.mxu0 0.0
        %1354 = vmatprep.subr.mxu0 0.0
        %1355 = vmatpush1.msra.mxu0 0.0
        %1356 = vmatprep.subr.mxu0 0.0
        %1357 = vmatpush1.msra.mxu0 0.0
        %1358 = vmatprep.subr.mxu0 0.0
        %1359 = vmatpush1.msra.mxu0 0.0
        %1360 = vmatprep.subr.mxu0 0.0
        %1361 = vmatpush1.msra.mxu0 0.0
        %1362 = vmatprep.subr.mxu0 0.0
        %1363 = vmatpush1.msra.mxu0 0.0
        %1364 = vmatprep.subr.mxu0 0.0
        %1365 = vmatpush1.msra.mxu0 0.0
        %1366 = vmatprep.subr.mxu0 0.0
        %1367 = vmatpush1.msra.mxu0 0.0
        %1368 = vmatprep.subr.mxu0 0.0
        %1369 = vmatpush1.msra.mxu0 0.0
        %1370 = vmatprep.subr.mxu0 0.0
        %1371 = vmatpush1.msra.mxu0 0.0
        %1372 = vmatprep.subr.mxu0 0.0
        %1373 = vmatpush1.msra.mxu0 0.0
        %1374 = vmatprep.subr.mxu0 0.0
        %1375 = vmatpush1.msra.mxu0 0.0
        %1376 = vmatprep.subr.mxu0 0.0
        %1377 = vmatpush1.msra.mxu0 0.0
        %1378 = vmatprep.subr.mxu0 0.0
        %1379 = vmatpush1.msra.mxu0 0.0
        %1380 = vmatprep.subr.mxu0 0.0
        %1381 = vmatpush1.msra.mxu0 0.0
        %1382 = vmatprep.subr.mxu0 0.0
        %1383 = vmatpush1.msra.mxu0 0.0
        %1384 = vmatprep.subr.mxu0 0.0
        %1385 = vmatpush1.msra.mxu0 0.0
        %1386 = vmatprep.subr.mxu0 0.0
        %1387 = vmatpush1.msra.mxu0 0.0
        %1388 = vmatprep.subr.mxu0 0.0
        %1389 = vmatpush1.msra.mxu0 0.0
        %1390 = vmatprep.subr.mxu0 0.0
        %1391 = vmatpush1.msra.mxu0 0.0
        %1392 = vmatprep.mubr.f32.mxu0 0.0
        %1393 = vmatmul.mubr.f32.gmra.mrb[0].mxu0 %v1326
        %v1394 = vpop.f32.mrb[0].mxu0
        %v1395 = vadd.f32 %v1323, %v1394
        %v1396 = vpop.f32.mrb[0].mxu0
        %1397 = vdwg.mxu0
        %v1398 = vadd.f32 %v1203, %v1395
        %1399 = vst.msk [vmem:[%s333] sm:$0xff] %vm336, %v1398
        %s1400 = sand.u32 %s207, 1
        %s1401 = scalar_lea.sflag [#allocation4], %s1400
        %s1402 = sand.u32 %s207, 1
        %s1403 = smul.addr %s1402, 8
        %s1404 = scalar_lea.vmem [#allocation7], %s1403
        // Predicated region
        $region61: #{tpu_custom_call.1} parent=51 // pred_check
          %p1405 = pneg %p217
        $region62: #{tpu_custom_call.1} parent=51 // pred_check_branch
          %1407 = sbr.rel (%p1405) target = $region64
        $region63: #{tpu_custom_call.1} parent=51 // pred_region
          %s1409 = ssub.s32 128, 128
          %1410 = vsyncadd %s1401, %s1409
          %s1411 = smul.addr %s26, 128
          %s1412 = scalar_lea.hbm %s8, %s1411
          %s1414 = sshll.u32 %s1404, 4
          %s1415 = int_to_ptr.vmem [resolvable:$true] %s1414
          %1417 = dma.vmem_to_hbm [thread:$0]  %s1415, 128, %s1412, %s1401
        $region64: #{tpu_custom_call.1} parent=51 // pred_fallthru
          _
      $region52: #{tpu_custom_call.1} parent=5 // pred_fallthru
        _
      %p1418 = scmp.le.s32.totalorder 2, %s21
      // Predicated region
      $region65: #{tpu_custom_call.1} parent=5 // pred_check
        %p1419 = pneg %p1418
      $region66: #{tpu_custom_call.1} parent=5 // pred_check_branch
        %1421 = sbr.rel (%p1419) target = $region68
      $region67: #{tpu_custom_call.1} parent=5 // pred_region
        %s1422 = ssub.s32 %s21, 2
        // Predicated region
        $region69: #{tpu_custom_call.1} parent=67 // pred_check
          %p1423 = pneg %p223
        $region70: #{tpu_custom_call.1} parent=67 // pred_check_branch
          %1425 = sbr.rel (%p1423) target = $region72
        $region71: #{tpu_custom_call.1} parent=67 // pred_region
          %s1426 = sand.u32 %s208, 1
          %s1427 = scalar_lea.sflag [#allocation4], %s1426
          %s1428 = sand.u32 %s208, 1
          %s1429 = smul.addr %s1428, 8
          %s1430 = scalar_lea.vmem [#allocation7], %s1429
          %1431 = dma.done %s1427, 128
        $region72: #{tpu_custom_call.1} parent=67 // pred_fallthru
          _
      $region68: #{tpu_custom_call.1} parent=5 // pred_fallthru
        _
    $region6: #{tpu_custom_call.1} parent=1 // loop_footer
      %s25 = sadd.s32 1, %s21
    $region7: #{tpu_custom_call.1} parent=1 // loop_footer_branch
      %20 = sbr.rel target = $region3
    $region8: #{tpu_custom_call.1} parent=1 // loop_exit
      _
    %1432 = vsyncpa [#allocation3], 1
    %s1433 = scalar_lea.sflag [#allocation3], 1
    %1434 = vsyncpa %s1433, 1
    %1435 = vsyncpa [#allocation6], 1
    %1436 = vsyncpa [#allocation4], 1
    %s1437 = scalar_lea.sflag [#allocation4], 1
    %1438 = vsyncpa %s1437, 1

</llo_original>
